<compile_context>
chip_gen: v5e
topology: v5e:2x2
jax: 0.10.0
libtpu: 0.0.40
codegen_flags: <defaults>
</compile_context>

<pallas_src>
import functools

import jax
import jax.numpy as jnp
from jax.experimental import pallas as pl
from jax.experimental.pallas import tpu as pltpu


# ---------------------------------------------------------------------------
# In-kernel helpers
# ---------------------------------------------------------------------------
def _layernorm(x, g, b, eps=1e-6):
    # Matches the Annotated-Transformer LayerNorm:
    #   a_2 * (x - mean) / (std + eps) + b_2   with unbiased std (torch default ddof=1)
    d = x.shape[-1]
    mean = jnp.mean(x, axis=-1, keepdims=True)
    var = jnp.sum((x - mean) ** 2, axis=-1, keepdims=True) / jnp.float32(d - 1)
    std = jnp.sqrt(var)
    return g * (x - mean) / (std + eps) + b


# ---------------------------------------------------------------------------
# Fused all-layer encoder kernel.  grid = (B, n_layers)
#   axis 0 (batch)  : "parallel"   -> megacore / both TCs
#   axis 1 (layer)  : "arbitrary"  -> sequential; per-layer weights streamed via index_map
# Running activation is kept in a VMEM scratch across the layer axis; the output block is
# written only at the last layer (fused final LayerNorm).
# ---------------------------------------------------------------------------
def bert_encoder_kernel(vl_ref,                      # scalar-prefetch: (B,) int32 in SMEM
                        x_ref,
                        g1_ref, be1_ref, wqkv_ref, bqkv_ref, wo_ref, bo_ref,
                        g2_ref, be2_ref, w1_ref, bf1_ref, w2_ref, bf2_ref,
                        fg_ref, fb_ref,
                        o_ref, acc_ref, *, n_heads):
    b = pl.program_id(0)
    l = pl.program_id(1)
    n_layers = pl.num_programs(1)

    # Initialize the running activation from the embedding block at the first layer.
    @pl.when(l == 0)
    def _():
        acc_ref[...] = x_ref[0]

    x = acc_ref[...]                                  # (S, D) f32 running activation
    S, D = x.shape
    dk = D // n_heads
    scale = jnp.float32(1.0) / jnp.sqrt(jnp.float32(dk))

    # Additive attention-mask bias built once from SMEM valid_lens (no HBM mask input).
    col = jax.lax.broadcasted_iota(jnp.int32, (1, S), 1)
    bias = jnp.where(col < vl_ref[b], 0.0, -1e9).astype(jnp.float32)   # (1, S) -> key dim

    # ---- sublayer 1: pre-LN -> fused-QKV multi-head attention -> residual ----
    h1 = _layernorm(x, g1_ref[0], be1_ref[0]).astype(jnp.bfloat16)
    qkv = jnp.dot(h1, wqkv_ref[0],
                  preferred_element_type=jnp.float32) + bqkv_ref[0]    # (S, 3D) f32

    q = qkv[:, :D] * scale                      # fold 1/sqrt(dk) into q
    k = qkv[:, D:2 * D]
    v = qkv[:, 2 * D:]

    qh = q.reshape(S, n_heads, dk).swapaxes(0, 1).astype(jnp.bfloat16)  # (H, S, dk)
    kh = k.reshape(S, n_heads, dk).swapaxes(0, 1).astype(jnp.bfloat16)
    vh = v.reshape(S, n_heads, dk).swapaxes(0, 1).astype(jnp.bfloat16)

    scores = jnp.einsum('hqd,hkd->hqk', qh, kh,
                        preferred_element_type=jnp.float32) + bias      # (H, S, S)
    m = jnp.max(scores, axis=-1, keepdims=True)
    p = jnp.exp(scores - m)
    p = p * pl.reciprocal(jnp.sum(p, axis=-1, keepdims=True), approx=True)
    ctx = jnp.einsum('hqk,hkd->hqd', p.astype(jnp.bfloat16), vh,
                     preferred_element_type=jnp.float32)                # (H, S, dk)

    attn = ctx.swapaxes(0, 1).reshape(S, D).astype(jnp.bfloat16)        # (S, D)
    attn = jnp.dot(attn, wo_ref[0],
                   preferred_element_type=jnp.float32) + bo_ref[0]

    x2 = x + attn                                   # dropout == identity (eval)

    # ---- sublayer 2: pre-LN -> position-wise FFN -> residual ----
    h2 = _layernorm(x2, g2_ref[0], be2_ref[0]).astype(jnp.bfloat16)
    ff = jnp.dot(h2, w1_ref[0],
                 preferred_element_type=jnp.float32) + bf1_ref[0]
    ff = jnp.maximum(ff, 0.0).astype(jnp.bfloat16)
    ff = jnp.dot(ff, w2_ref[0],
                 preferred_element_type=jnp.float32) + bf2_ref[0]

    x_out = x2 + ff
    acc_ref[...] = x_out

    # Fused final LayerNorm + single HBM writeback on the last layer.
    @pl.when(l == n_layers - 1)
    def _():
        o_ref[0] = _layernorm(x_out, fg_ref[...], fb_ref[...])


# ---------------------------------------------------------------------------
# Wrapper around pallas_call
# ---------------------------------------------------------------------------
def run_bert_encoder(x, valid_lens, layers, final_g, final_b, n_heads):
    B, S, D = x.shape
    L = layers["wqkv"].shape[0]
    F = layers["w1"].shape[-1]

    def lyr(shape):
        # per-layer stacked weight: stream block l at grid step (b, l)
        return pl.BlockSpec(shape, lambda b, l, vl: (l, 0, 0))

    in_specs = [
        pl.BlockSpec((1, S, D), lambda b, l, vl: (b, 0, 0)),    # x (embeddings)
        lyr((1, 1, D)), lyr((1, 1, D)),                         # g1, be1
        lyr((1, D, 3 * D)), lyr((1, 1, 3 * D)),                 # wqkv, bqkv
        lyr((1, D, D)), lyr((1, 1, D)),                         # wo, bo
        lyr((1, 1, D)), lyr((1, 1, D)),                         # g2, be2
        lyr((1, D, F)), lyr((1, 1, F)),                         # w1, bf1
        lyr((1, F, D)), lyr((1, 1, D)),                         # w2, bf2
        pl.BlockSpec((1, D), lambda b, l, vl: (0, 0)),          # final_g
        pl.BlockSpec((1, D), lambda b, l, vl: (0, 0)),          # final_b
    ]

    grid_spec = pltpu.PrefetchScalarGridSpec(
        num_scalar_prefetch=1,
        grid=(B, L),
        in_specs=in_specs,
        out_specs=pl.BlockSpec((1, S, D), lambda b, l, vl: (b, 0, 0)),
        scratch_shapes=[pltpu.VMEM((S, D), jnp.float32)],       # running activation
    )

    kernel = functools.partial(bert_encoder_kernel, n_heads=n_heads)
    return pl.pallas_call(
        kernel,
        out_shape=jax.ShapeDtypeStruct((B, S, D), jnp.float32),
        grid_spec=grid_spec,
        compiler_params=pltpu.CompilerParams(
            dimension_semantics=("parallel", "arbitrary"),
            vmem_limit_bytes=48 * 1024 * 1024,
        ),
    )(valid_lens, x,
      layers["g1"], layers["be1"], layers["wqkv"], layers["bqkv"],
      layers["wo"], layers["bo"], layers["g2"], layers["be2"],
      layers["w1"], layers["bf1"], layers["w2"], layers["bf2"],
      final_g, final_b)


# ---------------------------------------------------------------------------
# Parameter construction (deterministic, xavier-uniform for dim>1 tensors)
# Matmul weights stored bf16 (stacked per layer, QKV fused); biases / LN params f32.
# ---------------------------------------------------------------------------
def xavier_uniform(key, shape):
    fan_in, fan_out = shape
    a = (6.0 / (fan_in + fan_out)) ** 0.5
    return jax.random.uniform(key, shape, jnp.float32, -a, a)


def make_params(key, vocab_size, max_len, n_layers, d_model, d_ff):
    keys = iter(jax.random.split(key, 3 + 6 * n_layers))
    params = {
        "token_emb": xavier_uniform(next(keys), (vocab_size, d_model)),
        "segment_emb": xavier_uniform(next(keys), (2, d_model)),
        "pos_emb": xavier_uniform(next(keys), (max_len, d_model)),
        "final_g": jnp.ones((1, d_model), jnp.float32),
        "final_b": jnp.zeros((1, d_model), jnp.float32),
    }
    wqkv, wo, w1, w2 = [], [], [], []
    for _ in range(n_layers):
        wq = xavier_uniform(next(keys), (d_model, d_model))
        wk = xavier_uniform(next(keys), (d_model, d_model))
        wv = xavier_uniform(next(keys), (d_model, d_model))
        wqkv.append(jnp.concatenate([wq, wk, wv], axis=1))     # (D, 3D) fused QKV
        wo.append(xavier_uniform(next(keys), (d_model, d_model)))
        w1.append(xavier_uniform(next(keys), (d_model, d_ff)))
        w2.append(xavier_uniform(next(keys), (d_ff, d_model)))

    L = n_layers
    params["layers"] = {
        "g1":  jnp.ones((L, 1, d_model), jnp.float32),
        "be1": jnp.zeros((L, 1, d_model), jnp.float32),
        "wqkv": jnp.stack(wqkv).astype(jnp.bfloat16),
        "bqkv": jnp.zeros((L, 1, 3 * d_model), jnp.float32),
        "wo":  jnp.stack(wo).astype(jnp.bfloat16),
        "bo":  jnp.zeros((L, 1, d_model), jnp.float32),
        "g2":  jnp.ones((L, 1, d_model), jnp.float32),
        "be2": jnp.zeros((L, 1, d_model), jnp.float32),
        "w1":  jnp.stack(w1).astype(jnp.bfloat16),
        "bf1": jnp.zeros((L, 1, d_ff), jnp.float32),
        "w2":  jnp.stack(w2).astype(jnp.bfloat16),
        "bf2": jnp.zeros((L, 1, d_model), jnp.float32),
    }
    return params


# ---------------------------------------------------------------------------
# Full forward pass
# ---------------------------------------------------------------------------
def bert_encoder_forward(params, tokens, segments, valid_lens, n_heads):
    B, S = tokens.shape
    # Embedding sum (gathers) -- plain JAX glue.
    positions = jnp.arange(S, dtype=jnp.int32)
    x = (params["token_emb"][tokens]
         + params["segment_emb"][segments]
         + params["pos_emb"][positions][None, :, :]).astype(jnp.float32)

    return run_bert_encoder(x, valid_lens.astype(jnp.int32), params["layers"],
                            params["final_g"], params["final_b"], n_heads)


# ---------------------------------------------------------------------------
# Main
# ---------------------------------------------------------------------------
if __name__ == "__main__":
    # Small shapes consistent with the module's forward (scaled down from 768/12/12).
    B, S = 2, 8
    D_MODEL, D_FF, N_HEADS, N_LAYERS = 32, 128, 4, 2
    VOCAB, MAX_LEN = 50, 16

    key = jax.random.PRNGKey(0)
    kp, kt, ks = jax.random.split(key, 3)

    params = make_params(kp, VOCAB, MAX_LEN, N_LAYERS, D_MODEL, D_FF)

    tokens = jax.random.randint(kt, (B, S), 0, VOCAB, dtype=jnp.int32)
    segments = jax.random.randint(ks, (B, S), 0, 2, dtype=jnp.int32)
    valid_lens = jnp.array([S, 5], dtype=jnp.int32)

    out = bert_encoder_forward(params, tokens, segments, valid_lens, N_HEADS)
    out = jax.block_until_ready(out)

    assert out.shape == (B, S, D_MODEL)
    assert bool(jnp.all(jnp.isfinite(out)))
    print("KERNEL_OK")
</pallas_src>

<mosaic_0001>
module attributes {stable_mosaic.version = 11 : i64} {
  func.func @bert_encoder_kernel(%arg0: i32, %arg1: i32, %arg2: memref<2xi32, #tpu.memory_space<smem>>, %arg3: memref<1x8x32xf32, #tpu.memory_space<vmem>>, %arg4: memref<1x1x32xf32, #tpu.memory_space<vmem>>, %arg5: memref<1x1x32xf32, #tpu.memory_space<vmem>>, %arg6: memref<1x32x96xbf16, #tpu.memory_space<vmem>>, %arg7: memref<1x1x96xf32, #tpu.memory_space<vmem>>, %arg8: memref<1x32x32xbf16, #tpu.memory_space<vmem>>, %arg9: memref<1x1x32xf32, #tpu.memory_space<vmem>>, %arg10: memref<1x1x32xf32, #tpu.memory_space<vmem>>, %arg11: memref<1x1x32xf32, #tpu.memory_space<vmem>>, %arg12: memref<1x32x128xbf16, #tpu.memory_space<vmem>>, %arg13: memref<1x1x128xf32, #tpu.memory_space<vmem>>, %arg14: memref<1x128x32xbf16, #tpu.memory_space<vmem>>, %arg15: memref<1x1x32xf32, #tpu.memory_space<vmem>>, %arg16: memref<1x32xf32, #tpu.memory_space<vmem>>, %arg17: memref<1x32xf32, #tpu.memory_space<vmem>>, %arg18: memref<1x8x32xf32, #tpu.memory_space<vmem>>, %arg19: memref<8x32xf32, #tpu.memory_space<vmem>>) attributes {dimension_semantics = [#tpu.dimension_semantics<parallel>, #tpu.dimension_semantics<arbitrary>], iteration_bounds = array<i64: 2, 2>, scalar_prefetch = 1 : i64, scratch_operands = 1 : i64, tpu.core_type = #tpu.core_type<tc>, window_params = [{transform_indices = @transform_0, window_bounds = array<i64: 1, 8, 32>}, {transform_indices = @transform_1, window_bounds = array<i64: 1, 1, 32>}, {transform_indices = @transform_2, window_bounds = array<i64: 1, 1, 32>}, {transform_indices = @transform_3, window_bounds = array<i64: 1, 32, 96>}, {transform_indices = @transform_4, window_bounds = array<i64: 1, 1, 96>}, {transform_indices = @transform_5, window_bounds = array<i64: 1, 32, 32>}, {transform_indices = @transform_6, window_bounds = array<i64: 1, 1, 32>}, {transform_indices = @transform_7, window_bounds = array<i64: 1, 1, 32>}, {transform_indices = @transform_8, window_bounds = array<i64: 1, 1, 32>}, {transform_indices = @transform_9, window_bounds = array<i64: 1, 32, 128>}, {transform_indices = @transform_10, window_bounds = array<i64: 1, 1, 128>}, {transform_indices = @transform_11, window_bounds = array<i64: 1, 128, 32>}, {transform_indices = @transform_12, window_bounds = array<i64: 1, 1, 32>}, {pipeline_mode = #tpu.pipeline_mode<synchronous>, transform_indices = @transform_13, window_bounds = array<i64: 1, 32>}, {pipeline_mode = #tpu.pipeline_mode<synchronous>, transform_indices = @transform_14, window_bounds = array<i64: 1, 32>}, {transform_indices = @transform_15, window_bounds = array<i64: 1, 8, 32>}]} {
    %c0_i32 = arith.constant 0 : i32
    %0 = arith.cmpi eq, %arg1, %c0_i32 : i32
    %1 = arith.extui %0 : i1 to i32
    %c0_i32_0 = arith.constant 0 : i32
    %2 = arith.cmpi ne, %1, %c0_i32_0 : i32
    scf.if %2 {
      %c0_63 = arith.constant 0 : index
      %c0_64 = arith.constant 0 : index
      %c0_65 = arith.constant 0 : index
      %138 = vector.load %arg3[%c0_63, %c0_64, %c0_65] : memref<1x8x32xf32, #tpu.memory_space<vmem>>, vector<1x8x32xf32>
      %139 = vector.shape_cast %138 : vector<1x8x32xf32> to vector<8x32xf32>
      %c0_66 = arith.constant 0 : index
      %c0_67 = arith.constant 0 : index
      %140 = vector.load %arg19[%c0_66, %c0_67] : memref<8x32xf32, #tpu.memory_space<vmem>>, vector<8x32xf32>
      tpu.vector_store %arg19[%c0_66, %c0_67], %139 {strides = array<i32>} : memref<8x32xf32, #tpu.memory_space<vmem>>, vector<8x32xf32>,
    } else {
    }
    %c0 = arith.constant 0 : index
    %c0_1 = arith.constant 0 : index
    %3 = vector.load %arg19[%c0, %c0_1] : memref<8x32xf32, #tpu.memory_space<vmem>>, vector<8x32xf32>
    %cst = arith.constant 8.000000e+00 : f32
    %4 = math.sqrt %cst : f32
    %cst_2 = arith.constant 1.000000e+00 : f32
    %5 = arith.divf %cst_2, %4 : f32
    %6 = tpu.iota {dimensions = array<i32: 1>} : vector<1x8xi32>
    %7 = arith.index_cast %arg0 : i32 to index
    %8 = memref.load %arg2[%7] : memref<2xi32, #tpu.memory_space<smem>>
    %9 = vector.broadcast %8 : i32 to vector<1x8xi32>
    %10 = arith.cmpi slt, %6, %9 : vector<1x8xi32>
    %cst_3 = arith.constant 0.000000e+00 : f32
    %cst_4 = arith.constant -1.000000e+09 : f32
    %11 = vector.broadcast %cst_3 : f32 to vector<1x8xf32>
    %12 = vector.broadcast %cst_4 : f32 to vector<1x8xf32>
    %13 = arith.select %10, %11, %12 : vector<1x8xi1>, vector<1x8xf32>
    %c0_5 = arith.constant 0 : index
    %c0_6 = arith.constant 0 : index
    %c0_7 = arith.constant 0 : index
    %14 = vector.load %arg4[%c0_5, %c0_6, %c0_7] : memref<1x1x32xf32, #tpu.memory_space<vmem>>, vector<1x1x32xf32>
    %15 = vector.shape_cast %14 : vector<1x1x32xf32> to vector<1x32xf32>
    %c0_8 = arith.constant 0 : index
    %c0_9 = arith.constant 0 : index
    %c0_10 = arith.constant 0 : index
    %16 = vector.load %arg5[%c0_8, %c0_9, %c0_10] : memref<1x1x32xf32, #tpu.memory_space<vmem>>, vector<1x1x32xf32>
    %17 = vector.shape_cast %16 : vector<1x1x32xf32> to vector<1x32xf32>
    %cst_11 = arith.constant dense<0.000000e+00> : vector<8xf32>
    %18 = vector.multi_reduction <add>, %3, %cst_11 [1] : vector<8x32xf32> to vector<8xf32>
    %19 = vector.shape_cast %18 : vector<8xf32> to vector<8x1xf32>
    %cst_12 = arith.constant 3.200000e+01 : f32
    %20 = vector.broadcast %cst_12 : f32 to vector<8x1xf32>
    %21 = arith.divf %19, %20 : vector<8x1xf32>
    %22 = vector.broadcast %21 : vector<8x1xf32> to vector<8x32xf32>
    %23 = arith.subf %3, %22 : vector<8x32xf32>
    %24 = arith.mulf %23, %23 : vector<8x32xf32>
    %cst_13 = arith.constant dense<0.000000e+00> : vector<8xf32>
    %25 = vector.multi_reduction <add>, %24, %cst_13 [1] : vector<8x32xf32> to vector<8xf32>
    %26 = vector.shape_cast %25 : vector<8xf32> to vector<8x1xf32>
    %cst_14 = arith.constant 3.100000e+01 : f32
    %27 = vector.broadcast %cst_14 : f32 to vector<8x1xf32>
    %28 = arith.divf %26, %27 : vector<8x1xf32>
    %29 = math.sqrt %28 : vector<8x1xf32>
    %30 = vector.broadcast %21 : vector<8x1xf32> to vector<8x32xf32>
    %31 = arith.subf %3, %30 : vector<8x32xf32>
    %32 = vector.broadcast %15 : vector<1x32xf32> to vector<8x32xf32>
    %33 = arith.mulf %32, %31 : vector<8x32xf32>
    %cst_15 = arith.constant 9.99999997E-7 : f32
    %34 = vector.broadcast %cst_15 : f32 to vector<8x1xf32>
    %35 = arith.addf %29, %34 : vector<8x1xf32>
    %36 = vector.broadcast %35 : vector<8x1xf32> to vector<8x32xf32>
    %37 = arith.divf %33, %36 : vector<8x32xf32>
    %38 = vector.broadcast %17 : vector<1x32xf32> to vector<8x32xf32>
    %39 = arith.addf %37, %38 : vector<8x32xf32>
    %40 = arith.truncf %39 : vector<8x32xf32> to vector<8x32xbf16>
    %c0_16 = arith.constant 0 : index
    %c0_17 = arith.constant 0 : index
    %c0_18 = arith.constant 0 : index
    %41 = vector.load %arg6[%c0_16, %c0_17, %c0_18] : memref<1x32x96xbf16, #tpu.memory_space<vmem>>, vector<1x32x96xbf16>
    %42 = vector.shape_cast %41 : vector<1x32x96xbf16> to vector<32x96xbf16>
    %cst_19 = arith.constant dense<0.000000e+00> : vector<8x96xf32>
    %43 = tpu.matmul %40, %42, %cst_19 {dimension_numbers = #tpu.dot_dimension_numbers<[1], [0], [0], [1], [0, 0, 1, 1], [], []>} : vector<8x32xbf16>, vector<32x96xbf16>, vector<8x96xf32> -> vector<8x96xf32>
    %c0_20 = arith.constant 0 : index
    %c0_21 = arith.constant 0 : index
    %c0_22 = arith.constant 0 : index
    %44 = vector.load %arg7[%c0_20, %c0_21, %c0_22] : memref<1x1x96xf32, #tpu.memory_space<vmem>>, vector<1x1x96xf32>
    %45 = vector.shape_cast %44 : vector<1x1x96xf32> to vector<1x96xf32>
    %46 = vector.broadcast %45 : vector<1x96xf32> to vector<8x96xf32>
    %47 = arith.addf %43, %46 : vector<8x96xf32>
    %48 = vector.extract_strided_slice %47 {offsets = [0, 0], sizes = [8, 32], strides = [1, 1]} : vector<8x96xf32> to vector<8x32xf32>
    %49 = vector.broadcast %5 : f32 to vector<8x32xf32>
    %50 = arith.mulf %48, %49 : vector<8x32xf32>
    %51 = vector.extract_strided_slice %47 {offsets = [0, 32], sizes = [8, 32], strides = [1, 1]} : vector<8x96xf32> to vector<8x32xf32>
    %52 = vector.extract_strided_slice %47 {offsets = [0, 64], sizes = [8, 32], strides = [1, 1]} : vector<8x96xf32> to vector<8x32xf32>
    %53 = vector.shape_cast %50 : vector<8x32xf32> to vector<8x4x8xf32>
    %54 = tpu.transpose %53, [1, 0, 2] : vector<8x4x8xf32> -> vector<4x8x8xf32>
    %55 = arith.truncf %54 : vector<4x8x8xf32> to vector<4x8x8xbf16>
    %56 = vector.shape_cast %51 : vector<8x32xf32> to vector<8x4x8xf32>
    %57 = tpu.transpose %56, [1, 0, 2] : vector<8x4x8xf32> -> vector<4x8x8xf32>
    %58 = arith.truncf %57 : vector<4x8x8xf32> to vector<4x8x8xbf16>
    %59 = vector.shape_cast %52 : vector<8x32xf32> to vector<8x4x8xf32>
    %60 = tpu.transpose %59, [1, 0, 2] : vector<8x4x8xf32> -> vector<4x8x8xf32>
    %61 = arith.truncf %60 : vector<4x8x8xf32> to vector<4x8x8xbf16>
    "tpu.trace_start"() <{level = 10 : i32, message = "hqd,hkd->hqk"}> : () -> ()
    %cst_23 = arith.constant dense<0.000000e+00> : vector<4x8x8xf32>
    %62 = tpu.matmul %55, %58, %cst_23 {dimension_numbers = #tpu.dot_dimension_numbers<[2], [2], [1], [1], [0, 0, 0, 1, 1, 1], [0], [0]>} : vector<4x8x8xbf16>, vector<4x8x8xbf16>, vector<4x8x8xf32> -> vector<4x8x8xf32>
    "tpu.trace_stop"() : () -> ()
    %63 = vector.shape_cast %13 : vector<1x8xf32> to vector<1x1x8xf32>
    %64 = vector.broadcast %63 : vector<1x1x8xf32> to vector<4x8x8xf32>
    %65 = arith.addf %62, %64 : vector<4x8x8xf32>
    %cst_24 = arith.constant dense<0xFF800000> : vector<4x8xf32>
    %66 = vector.multi_reduction <maximumf>, %65, %cst_24 [2] : vector<4x8x8xf32> to vector<4x8xf32>
    %67 = vector.shape_cast %66 : vector<4x8xf32> to vector<4x8x1xf32>
    %68 = vector.broadcast %67 : vector<4x8x1xf32> to vector<4x8x8xf32>
    %69 = arith.subf %65, %68 : vector<4x8x8xf32>
    %70 = math.exp %69 : vector<4x8x8xf32>
    %cst_25 = arith.constant dense<0.000000e+00> : vector<4x8xf32>
    %71 = vector.multi_reduction <add>, %70, %cst_25 [2] : vector<4x8x8xf32> to vector<4x8xf32>
    %72 = vector.shape_cast %71 : vector<4x8xf32> to vector<4x8x1xf32>
    %73 = tpu.reciprocal %72 {approx = true} : vector<4x8x1xf32> -> vector<4x8x1xf32>
    %74 = vector.broadcast %73 : vector<4x8x1xf32> to vector<4x8x8xf32>
    %75 = arith.mulf %70, %74 : vector<4x8x8xf32>
    %76 = arith.truncf %75 : vector<4x8x8xf32> to vector<4x8x8xbf16>
    "tpu.trace_start"() <{level = 10 : i32, message = "hqk,hkd->hqd"}> : () -> ()
    %cst_26 = arith.constant dense<0.000000e+00> : vector<4x8x8xf32>
    %77 = tpu.matmul %76, %61, %cst_26 {dimension_numbers = #tpu.dot_dimension_numbers<[2], [1], [1], [2], [0, 0, 0, 1, 1, 2], [0], [0]>} : vector<4x8x8xbf16>, vector<4x8x8xbf16>, vector<4x8x8xf32> -> vector<4x8x8xf32>
    "tpu.trace_stop"() : () -> ()
    %78 = tpu.transpose %77, [1, 0, 2] : vector<4x8x8xf32> -> vector<8x4x8xf32>
    %79 = vector.shape_cast %78 : vector<8x4x8xf32> to vector<8x32xf32>
    %80 = arith.truncf %79 : vector<8x32xf32> to vector<8x32xbf16>
    %c0_27 = arith.constant 0 : index
    %c0_28 = arith.constant 0 : index
    %c0_29 = arith.constant 0 : index
    %81 = vector.load %arg8[%c0_27, %c0_28, %c0_29] : memref<1x32x32xbf16, #tpu.memory_space<vmem>>, vector<1x32x32xbf16>
    %82 = vector.shape_cast %81 : vector<1x32x32xbf16> to vector<32x32xbf16>
    %cst_30 = arith.constant dense<0.000000e+00> : vector<8x32xf32>
    %83 = tpu.matmul %80, %82, %cst_30 {dimension_numbers = #tpu.dot_dimension_numbers<[1], [0], [0], [1], [0, 0, 1, 1], [], []>} : vector<8x32xbf16>, vector<32x32xbf16>, vector<8x32xf32> -> vector<8x32xf32>
    %c0_31 = arith.constant 0 : index
    %c0_32 = arith.constant 0 : index
    %c0_33 = arith.constant 0 : index
    %84 = vector.load %arg9[%c0_31, %c0_32, %c0_33] : memref<1x1x32xf32, #tpu.memory_space<vmem>>, vector<1x1x32xf32>
    %85 = vector.shape_cast %84 : vector<1x1x32xf32> to vector<1x32xf32>
    %86 = vector.broadcast %85 : vector<1x32xf32> to vector<8x32xf32>
    %87 = arith.addf %83, %86 : vector<8x32xf32>
    %88 = arith.addf %3, %87 : vector<8x32xf32>
    %c0_34 = arith.constant 0 : index
    %c0_35 = arith.constant 0 : index
    %c0_36 = arith.constant 0 : index
    %89 = vector.load %arg10[%c0_34, %c0_35, %c0_36] : memref<1x1x32xf32, #tpu.memory_space<vmem>>, vector<1x1x32xf32>
    %90 = vector.shape_cast %89 : vector<1x1x32xf32> to vector<1x32xf32>
    %c0_37 = arith.constant 0 : index
    %c0_38 = arith.constant 0 : index
    %c0_39 = arith.constant 0 : index
    %91 = vector.load %arg11[%c0_37, %c0_38, %c0_39] : memref<1x1x32xf32, #tpu.memory_space<vmem>>, vector<1x1x32xf32>
    %92 = vector.shape_cast %91 : vector<1x1x32xf32> to vector<1x32xf32>
    %cst_40 = arith.constant dense<0.000000e+00> : vector<8xf32>
    %93 = vector.multi_reduction <add>, %88, %cst_40 [1] : vector<8x32xf32> to vector<8xf32>
    %94 = vector.shape_cast %93 : vector<8xf32> to vector<8x1xf32>
    %cst_41 = arith.constant 3.200000e+01 : f32
    %95 = vector.broadcast %cst_41 : f32 to vector<8x1xf32>
    %96 = arith.divf %94, %95 : vector<8x1xf32>
    %97 = vector.broadcast %96 : vector<8x1xf32> to vector<8x32xf32>
    %98 = arith.subf %88, %97 : vector<8x32xf32>
    %99 = arith.mulf %98, %98 : vector<8x32xf32>
    %cst_42 = arith.constant dense<0.000000e+00> : vector<8xf32>
    %100 = vector.multi_reduction <add>, %99, %cst_42 [1] : vector<8x32xf32> to vector<8xf32>
    %101 = vector.shape_cast %100 : vector<8xf32> to vector<8x1xf32>
    %cst_43 = arith.constant 3.100000e+01 : f32
    %102 = vector.broadcast %cst_43 : f32 to vector<8x1xf32>
    %103 = arith.divf %101, %102 : vector<8x1xf32>
    %104 = math.sqrt %103 : vector<8x1xf32>
    %105 = vector.broadcast %96 : vector<8x1xf32> to vector<8x32xf32>
    %106 = arith.subf %88, %105 : vector<8x32xf32>
    %107 = vector.broadcast %90 : vector<1x32xf32> to vector<8x32xf32>
    %108 = arith.mulf %107, %106 : vector<8x32xf32>
    %cst_44 = arith.constant 9.99999997E-7 : f32
    %109 = vector.broadcast %cst_44 : f32 to vector<8x1xf32>
    %110 = arith.addf %104, %109 : vector<8x1xf32>
    %111 = vector.broadcast %110 : vector<8x1xf32> to vector<8x32xf32>
    %112 = arith.divf %108, %111 : vector<8x32xf32>
    %113 = vector.broadcast %92 : vector<1x32xf32> to vector<8x32xf32>
    %114 = arith.addf %112, %113 : vector<8x32xf32>
    %115 = arith.truncf %114 : vector<8x32xf32> to vector<8x32xbf16>
    %c0_45 = arith.constant 0 : index
    %c0_46 = arith.constant 0 : index
    %c0_47 = arith.constant 0 : index
    %116 = vector.load %arg12[%c0_45, %c0_46, %c0_47] : memref<1x32x128xbf16, #tpu.memory_space<vmem>>, vector<1x32x128xbf16>
    %117 = vector.shape_cast %116 : vector<1x32x128xbf16> to vector<32x128xbf16>
    %cst_48 = arith.constant dense<0.000000e+00> : vector<8x128xf32>
    %118 = tpu.matmul %115, %117, %cst_48 {dimension_numbers = #tpu.dot_dimension_numbers<[1], [0], [0], [1], [0, 0, 1, 1], [], []>} : vector<8x32xbf16>, vector<32x128xbf16>, vector<8x128xf32> -> vector<8x128xf32>
    %c0_49 = arith.constant 0 : index
    %c0_50 = arith.constant 0 : index
    %c0_51 = arith.constant 0 : index
    %119 = vector.load %arg13[%c0_49, %c0_50, %c0_51] : memref<1x1x128xf32, #tpu.memory_space<vmem>>, vector<1x1x128xf32>
    %120 = vector.shape_cast %119 : vector<1x1x128xf32> to vector<1x128xf32>
    %121 = vector.broadcast %120 : vector<1x128xf32> to vector<8x128xf32>
    %122 = arith.addf %118, %121 : vector<8x128xf32>
    %cst_52 = arith.constant 0.000000e+00 : f32
    %123 = vector.broadcast %cst_52 : f32 to vector<8x128xf32>
    %124 = arith.maximumf %122, %123 : vector<8x128xf32>
    %125 = arith.truncf %124 : vector<8x128xf32> to vector<8x128xbf16>
    %c0_53 = arith.constant 0 : index
    %c0_54 = arith.constant 0 : index
    %c0_55 = arith.constant 0 : index
    %126 = vector.load %arg14[%c0_53, %c0_54, %c0_55] : memref<1x128x32xbf16, #tpu.memory_space<vmem>>, vector<1x128x32xbf16>
    %127 = vector.shape_cast %126 : vector<1x128x32xbf16> to vector<128x32xbf16>
    %cst_56 = arith.constant dense<0.000000e+00> : vector<8x32xf32>
    %128 = tpu.matmul %125, %127, %cst_56 {dimension_numbers = #tpu.dot_dimension_numbers<[1], [0], [0], [1], [0, 0, 1, 1], [], []>} : vector<8x128xbf16>, vector<128x32xbf16>, vector<8x32xf32> -> vector<8x32xf32>
    %c0_57 = arith.constant 0 : index
    %c0_58 = arith.constant 0 : index
    %c0_59 = arith.constant 0 : index
    %129 = vector.load %arg15[%c0_57, %c0_58, %c0_59] : memref<1x1x32xf32, #tpu.memory_space<vmem>>, vector<1x1x32xf32>
    %130 = vector.shape_cast %129 : vector<1x1x32xf32> to vector<1x32xf32>
    %131 = vector.broadcast %130 : vector<1x32xf32> to vector<8x32xf32>
    %132 = arith.addf %128, %131 : vector<8x32xf32>
    %133 = arith.addf %88, %132 : vector<8x32xf32>
    %c0_60 = arith.constant 0 : index
    %c0_61 = arith.constant 0 : index
    %134 = vector.load %arg19[%c0_60, %c0_61] : memref<8x32xf32, #tpu.memory_space<vmem>>, vector<8x32xf32>
    tpu.vector_store %arg19[%c0_60, %c0_61], %133 {strides = array<i32>} : memref<8x32xf32, #tpu.memory_space<vmem>>, vector<8x32xf32>,
    %c1_i32 = arith.constant 1 : i32
    %135 = arith.cmpi eq, %arg1, %c1_i32 : i32
    %136 = arith.extui %135 : i1 to i32
    %c0_i32_62 = arith.constant 0 : i32
    %137 = arith.cmpi ne, %136, %c0_i32_62 : i32
    scf.if %137 {
      %c0_63 = arith.constant 0 : index
      %c0_64 = arith.constant 0 : index
      %138 = vector.load %arg16[%c0_63, %c0_64] : memref<1x32xf32, #tpu.memory_space<vmem>>, vector<1x32xf32>
      %c0_65 = arith.constant 0 : index
      %c0_66 = arith.constant 0 : index
      %139 = vector.load %arg17[%c0_65, %c0_66] : memref<1x32xf32, #tpu.memory_space<vmem>>, vector<1x32xf32>
      %cst_67 = arith.constant dense<0.000000e+00> : vector<8xf32>
      %140 = vector.multi_reduction <add>, %133, %cst_67 [1] : vector<8x32xf32> to vector<8xf32>
      %141 = vector.shape_cast %140 : vector<8xf32> to vector<8x1xf32>
      %cst_68 = arith.constant 3.200000e+01 : f32
      %142 = vector.broadcast %cst_68 : f32 to vector<8x1xf32>
      %143 = arith.divf %141, %142 : vector<8x1xf32>
      %144 = vector.broadcast %143 : vector<8x1xf32> to vector<8x32xf32>
      %145 = arith.subf %133, %144 : vector<8x32xf32>
      %146 = arith.mulf %145, %145 : vector<8x32xf32>
      %cst_69 = arith.constant dense<0.000000e+00> : vector<8xf32>
      %147 = vector.multi_reduction <add>, %146, %cst_69 [1] : vector<8x32xf32> to vector<8xf32>
      %148 = vector.shape_cast %147 : vector<8xf32> to vector<8x1xf32>
      %cst_70 = arith.constant 3.100000e+01 : f32
      %149 = vector.broadcast %cst_70 : f32 to vector<8x1xf32>
      %150 = arith.divf %148, %149 : vector<8x1xf32>
      %151 = math.sqrt %150 : vector<8x1xf32>
      %152 = vector.broadcast %143 : vector<8x1xf32> to vector<8x32xf32>
      %153 = arith.subf %133, %152 : vector<8x32xf32>
      %154 = vector.broadcast %138 : vector<1x32xf32> to vector<8x32xf32>
      %155 = arith.mulf %154, %153 : vector<8x32xf32>
      %cst_71 = arith.constant 9.99999997E-7 : f32
      %156 = vector.broadcast %cst_71 : f32 to vector<8x1xf32>
      %157 = arith.addf %151, %156 : vector<8x1xf32>
      %158 = vector.broadcast %157 : vector<8x1xf32> to vector<8x32xf32>
      %159 = arith.divf %155, %158 : vector<8x32xf32>
      %160 = vector.broadcast %139 : vector<1x32xf32> to vector<8x32xf32>
      %161 = arith.addf %159, %160 : vector<8x32xf32>
      %c0_72 = arith.constant 0 : index
      %c0_73 = arith.constant 0 : index
      %c0_74 = arith.constant 0 : index
      %162 = vector.load %arg18[%c0_72, %c0_73, %c0_74] : memref<1x8x32xf32, #tpu.memory_space<vmem>>, vector<1x8x32xf32>
      %163 = vector.shape_cast %162 : vector<1x8x32xf32> to vector<8x32xf32>
      %164 = vector.shape_cast %161 : vector<8x32xf32> to vector<1x8x32xf32>
      tpu.vector_store %arg18[%c0_72, %c0_73, %c0_74], %164 {strides = array<i32>} : memref<1x8x32xf32, #tpu.memory_space<vmem>>, vector<1x8x32xf32>,
    } else {
    }
    return
  }
  func.func @transform_0(%arg0: i32, %arg1: i32, %arg2: memref<2xi32, #tpu.memory_space<smem>>) -> (i32, i32, i32) {
    %c0_i32 = arith.constant 0 : i32
    %c0_i32_0 = arith.constant 0 : i32
    %c0_i32_1 = arith.constant 0 : i32
    return %arg0, %c0_i32, %c0_i32_0 : i32, i32, i32
  }
  func.func @transform_1(%arg0: i32, %arg1: i32, %arg2: memref<2xi32, #tpu.memory_space<smem>>) -> (i32, i32, i32) {
    %c0_i32 = arith.constant 0 : i32
    %c0_i32_0 = arith.constant 0 : i32
    %c0_i32_1 = arith.constant 0 : i32
    return %arg1, %c0_i32, %c0_i32_0 : i32, i32, i32
  }
  func.func @transform_2(%arg0: i32, %arg1: i32, %arg2: memref<2xi32, #tpu.memory_space<smem>>) -> (i32, i32, i32) {
    %c0_i32 = arith.constant 0 : i32
    %c0_i32_0 = arith.constant 0 : i32
    %c0_i32_1 = arith.constant 0 : i32
    return %arg1, %c0_i32, %c0_i32_0 : i32, i32, i32
  }
  func.func @transform_3(%arg0: i32, %arg1: i32, %arg2: memref<2xi32, #tpu.memory_space<smem>>) -> (i32, i32, i32) {
    %c0_i32 = arith.constant 0 : i32
    %c0_i32_0 = arith.constant 0 : i32
    %c0_i32_1 = arith.constant 0 : i32
    return %arg1, %c0_i32, %c0_i32_0 : i32, i32, i32
  }
  func.func @transform_4(%arg0: i32, %arg1: i32, %arg2: memref<2xi32, #tpu.memory_space<smem>>) -> (i32, i32, i32) {
    %c0_i32 = arith.constant 0 : i32
    %c0_i32_0 = arith.constant 0 : i32
    %c0_i32_1 = arith.constant 0 : i32
    return %arg1, %c0_i32, %c0_i32_0 : i32, i32, i32
  }
  func.func @transform_5(%arg0: i32, %arg1: i32, %arg2: memref<2xi32, #tpu.memory_space<smem>>) -> (i32, i32, i32) {
    %c0_i32 = arith.constant 0 : i32
    %c0_i32_0 = arith.constant 0 : i32
    %c0_i32_1 = arith.constant 0 : i32
    return %arg1, %c0_i32, %c0_i32_0 : i32, i32, i32
  }
  func.func @transform_6(%arg0: i32, %arg1: i32, %arg2: memref<2xi32, #tpu.memory_space<smem>>) -> (i32, i32, i32) {
    %c0_i32 = arith.constant 0 : i32
    %c0_i32_0 = arith.constant 0 : i32
    %c0_i32_1 = arith.constant 0 : i32
    return %arg1, %c0_i32, %c0_i32_0 : i32, i32, i32
  }
  func.func @transform_7(%arg0: i32, %arg1: i32, %arg2: memref<2xi32, #tpu.memory_space<smem>>) -> (i32, i32, i32) {
    %c0_i32 = arith.constant 0 : i32
    %c0_i32_0 = arith.constant 0 : i32
    %c0_i32_1 = arith.constant 0 : i32
    return %arg1, %c0_i32, %c0_i32_0 : i32, i32, i32
  }
  func.func @transform_8(%arg0: i32, %arg1: i32, %arg2: memref<2xi32, #tpu.memory_space<smem>>) -> (i32, i32, i32) {
    %c0_i32 = arith.constant 0 : i32
    %c0_i32_0 = arith.constant 0 : i32
    %c0_i32_1 = arith.constant 0 : i32
    return %arg1, %c0_i32, %c0_i32_0 : i32, i32, i32
  }
  func.func @transform_9(%arg0: i32, %arg1: i32, %arg2: memref<2xi32, #tpu.memory_space<smem>>) -> (i32, i32, i32) {
    %c0_i32 = arith.constant 0 : i32
    %c0_i32_0 = arith.constant 0 : i32
    %c0_i32_1 = arith.constant 0 : i32
    return %arg1, %c0_i32, %c0_i32_0 : i32, i32, i32
  }
  func.func @transform_10(%arg0: i32, %arg1: i32, %arg2: memref<2xi32, #tpu.memory_space<smem>>) -> (i32, i32, i32) {
    %c0_i32 = arith.constant 0 : i32
    %c0_i32_0 = arith.constant 0 : i32
    %c0_i32_1 = arith.constant 0 : i32
    return %arg1, %c0_i32, %c0_i32_0 : i32, i32, i32
  }
  func.func @transform_11(%arg0: i32, %arg1: i32, %arg2: memref<2xi32, #tpu.memory_space<smem>>) -> (i32, i32, i32) {
    %c0_i32 = arith.constant 0 : i32
    %c0_i32_0 = arith.constant 0 : i32
    %c0_i32_1 = arith.constant 0 : i32
    return %arg1, %c0_i32, %c0_i32_0 : i32, i32, i32
  }
  func.func @transform_12(%arg0: i32, %arg1: i32, %arg2: memref<2xi32, #tpu.memory_space<smem>>) -> (i32, i32, i32) {
    %c0_i32 = arith.constant 0 : i32
    %c0_i32_0 = arith.constant 0 : i32
    %c0_i32_1 = arith.constant 0 : i32
    return %arg1, %c0_i32, %c0_i32_0 : i32, i32, i32
  }
  func.func @transform_13(%arg0: i32, %arg1: i32, %arg2: memref<2xi32, #tpu.memory_space<smem>>) -> (i32, i32) {
    %c0_i32 = arith.constant 0 : i32
    %c0_i32_0 = arith.constant 0 : i32
    %c0_i32_1 = arith.constant 0 : i32
    return %c0_i32, %c0_i32_0 : i32, i32
  }
  func.func @transform_14(%arg0: i32, %arg1: i32, %arg2: memref<2xi32, #tpu.memory_space<smem>>) -> (i32, i32) {
    %c0_i32 = arith.constant 0 : i32
    %c0_i32_0 = arith.constant 0 : i32
    %c0_i32_1 = arith.constant 0 : i32
    return %c0_i32, %c0_i32_0 : i32, i32
  }
  func.func @transform_15(%arg0: i32, %arg1: i32, %arg2: memref<2xi32, #tpu.memory_space<smem>>) -> (i32, i32, i32) {
    %c0_i32 = arith.constant 0 : i32
    %c0_i32_0 = arith.constant 0 : i32
    %c0_i32_1 = arith.constant 0 : i32
    return %arg0, %c0_i32, %c0_i32_0 : i32, i32, i32
  }
}

</mosaic_0001>

<llo_original>
// kernel: tpu_custom_call.1
$region0: #{tpu_custom_call.1}
  #allocation0 [shape = 'u32[]', space=smem, size = 0x4, offset = 0x4, fixed_abs, tag = 'smem constant byte address 0x4 - core index']
  #allocation1 [shape = 'u32[72,128]{1,0:T(1,128)}', space=vmem, size = 0x9000, scoped, tag = 'internal scratch']
  #allocation2 [shape = 'f32[8,32]{1,0:T(8,128)}', space=vmem, size = 0x1000, scoped, tag = 'scratch operand']
  #allocation3 [shape = 's32[1]{0}', space=sflag, size = 0x4, scoped, tag = 'scoped memory for tpu_custom_call.1']
  #allocation4 [shape = 'u8[512]{0}', space=smem, size = 0x200, scoped, tag = 'prefetched SMEM operand 0']
  %s0 = inlined_call_operand.vmem [shape: s32[2], index: 0, kind: input, shape index: {}]
  %s1 = inlined_call_operand.vmem [shape: f32[2,8,32], index: 1, kind: input, shape index: {}]
  %s2 = inlined_call_operand.vmem [shape: f32[2,1,32], index: 2, kind: input, shape index: {}]
  %s3 = inlined_call_operand.vmem [shape: f32[2,1,32], index: 3, kind: input, shape index: {}]
  %s4 = inlined_call_operand.vmem [shape: bf16[2,32,96], index: 4, kind: input, shape index: {}]
  %s5 = inlined_call_operand.vmem [shape: f32[2,1,96], index: 5, kind: input, shape index: {}]
  %s6 = inlined_call_operand.vmem [shape: bf16[2,32,32], index: 6, kind: input, shape index: {}]
  %s7 = inlined_call_operand.vmem [shape: f32[2,1,32], index: 7, kind: input, shape index: {}]
  %s8 = inlined_call_operand.vmem [shape: f32[2,1,32], index: 8, kind: input, shape index: {}]
  %s9 = inlined_call_operand.vmem [shape: f32[2,1,32], index: 9, kind: input, shape index: {}]
  %s10 = inlined_call_operand.vmem [shape: bf16[2,32,128], index: 10, kind: input, shape index: {}]
  %s11 = inlined_call_operand.vmem [shape: f32[2,1,128], index: 11, kind: input, shape index: {}]
  %s12 = inlined_call_operand.vmem [shape: bf16[2,128,32], index: 12, kind: input, shape index: {}]
  %s13 = inlined_call_operand.vmem [shape: f32[2,1,32], index: 13, kind: input, shape index: {}]
  %s14 = inlined_call_operand.vmem [shape: f32[1,32], index: 14, kind: input, shape index: {}]
  %s15 = inlined_call_operand.vmem [shape: f32[1,32], index: 15, kind: input, shape index: {}]
  %s16 = inlined_call_operand.hbm [shape: f32[2,8,32], index: 16, kind: output, shape index: {}]
  %s17 = sld [smem:[#allocation0]]
  $region101: #{tpu_custom_call.1} parent=0
    _
  %s19 = ssub.s32 1, %s17
  %s20 = scalar_select 0, %s19, %s17
  %s22 = sshll.u32 %s0, 4
  %s23 = int_to_ptr.vmem [resolvable:$true] %s22
  %25 = dma.vmem_to_smem %s23, 16, [#allocation4], [#allocation3]
  %27 = dma.done [#allocation3], 16
  %28 = sfence
  $region1: #{tpu_custom_call.1} parent=0
    #allocation5 [shape = 'u8[8192]{0}', space=vmem, size = 0x2000, scoped, tag = 'output window, operand 0']
    #allocation6 [shape = 's32[2]{0}', space=sflag, size = 0x8, scoped, tag = 'scoped memory for tpu_custom_call.1']
    %29 = vsyncpa [#allocation6], 0
    %s30 = scalar_lea.sflag [#allocation6], 1
    %31 = vsyncpa %s30, 0
    loop: start=0, step=1, limit=6
    $region2: #{tpu_custom_call.1} parent=1 // loop_pre_header
      _
    $region3: #{tpu_custom_call.1} parent=1 // loop_header
      %s33 = sphi 0, %s37
      %p34 = scmp.ge.s32.totalorder %s33, 6
      %s40 = sphi 0, %s52
      %s41 = sphi 0, %s48
      %s42 = sphi 0, %s40
      %s43 = sphi 0, %s41
      %s44 = sphi 0, %s42
      %s45 = sphi 0, %s43
      %s55 = sphi 0, %s57
      %s58 = sphi 0, %s55
      %s59 = sphi 0, %s58
      %s75 = sphi 0, %s59
      %s81 = sphi 0, %s83
      %s84 = sphi 0, %s81
      %s85 = sphi 0, %s84
      %s101 = sphi 0, %s85
      %s107 = sphi 0, %s109
      %s110 = sphi 0, %s107
      %s111 = sphi 0, %s110
      %s127 = sphi 0, %s111
      %s133 = sphi 0, %s135
      %s136 = sphi 0, %s133
      %s137 = sphi 0, %s136
      %s153 = sphi 0, %s137
      %s159 = sphi 0, %s161
      %s162 = sphi 0, %s159
      %s163 = sphi 0, %s162
      %s179 = sphi 0, %s163
      %s185 = sphi 0, %s187
      %s188 = sphi 0, %s185
      %s189 = sphi 0, %s188
      %s205 = sphi 0, %s189
      %s211 = sphi 0, %s213
      %s214 = sphi 0, %s211
      %s215 = sphi 0, %s214
      %s231 = sphi 0, %s215
      %s237 = sphi 0, %s239
      %s240 = sphi 0, %s237
      %s241 = sphi 0, %s240
      %s257 = sphi 0, %s241
      %s263 = sphi 0, %s265
      %s266 = sphi 0, %s263
      %s267 = sphi 0, %s266
      %s283 = sphi 0, %s267
      %s289 = sphi 0, %s291
      %s292 = sphi 0, %s289
      %s293 = sphi 0, %s292
      %s309 = sphi 0, %s293
      %s315 = sphi 0, %s317
      %s318 = sphi 0, %s315
      %s319 = sphi 0, %s318
      %s335 = sphi 0, %s319
      %s341 = sphi 0, %s343
      %s344 = sphi 0, %s341
      %s345 = sphi 0, %s344
      %s361 = sphi 0, %s345
      %s367 = sphi 0, %s369
      %s370 = sphi 0, %s367
      %s371 = sphi 0, %s370
      %s387 = sphi 0, %s371
      %s391 = sphi 0, %s391
      %s393 = sphi 0, %s391
      %s394 = sphi 0, %s393
      %s408 = sphi 0, %s394
      %s412 = sphi 0, %s412
      %s414 = sphi 0, %s412
      %s415 = sphi 0, %s414
      %s429 = sphi 0, %s415
      %s435 = sphi 0, %s437
      %s438 = sphi 0, %s435
      %s439 = sphi 0, %s438
      %s455 = sphi 0, %s439
    $region4: #{tpu_custom_call.1} parent=1 // loop_header_branch
      %36 = sbr.rel (%p34) target = $region8
    $region5: #{tpu_custom_call.1} parent=1 // loop_body
      %s38 = ssub.s32 %s33, 1
      %s39 = ssub.s32 %s33, 2
      %s46 = sadd.s32 1, %s41
      %p47 = scmp.ge.s32.totalorder %s46, 2
      %s48 = scalar_select %p47, 0, %s46
      %s49 = sadd.s32 1, %s40
      %s50 = scalar_select %p47, %s49, %s40
      %p51 = scmp.ge.s32.totalorder %s50, 2
      %s52 = scalar_select %p51, 0, %s50
      %s53 = ssub.s32 %s40, %s52
      %p54 = scmp.eq.s32.totalorder %s53, 0
      %s56 = sadd.s32 %s55, 1
      %s57 = scalar_select %p54, %s55, %s56
      %p60 = pneg %p54
      %p61 = scmp.eq.s32.totalorder %s33, 3
      %p62 = por %p60, %p61
      %p63 = scmp.ne.s32.totalorder %s55, %s58
      %p64 = scmp.eq.s32.totalorder %s33, 0
      %p65 = por %p63, %p64
      %p66 = scmp.ne.s32.totalorder %s55, %s58
      %p67 = scmp.eq.s32.totalorder %s38, 3
      %p68 = por %p66, %p67
      %p69 = scmp.ne.s32.totalorder %s58, %s59
      %p70 = scmp.eq.s32.totalorder %s38, 0
      %p71 = por %p69, %p70
      %p72 = scmp.ne.s32.totalorder %s58, %s59
      %p73 = scmp.eq.s32.totalorder %s39, 3
      %p74 = por %p72, %p73
      %p76 = scmp.ne.s32.totalorder %s59, %s75
      %p77 = scmp.eq.s32.totalorder %s39, 0
      %p78 = por %p76, %p77
      %s79 = ssub.s32 %s41, %s48
      %p80 = scmp.eq.s32.totalorder %s79, 0
      %s82 = sadd.s32 %s81, 1
      %s83 = scalar_select %p80, %s81, %s82
      %p86 = pneg %p80
      %p87 = scmp.eq.s32.totalorder %s33, 3
      %p88 = por %p86, %p87
      %p89 = scmp.ne.s32.totalorder %s81, %s84
      %p90 = scmp.eq.s32.totalorder %s33, 0
      %p91 = por %p89, %p90
      %p92 = scmp.ne.s32.totalorder %s81, %s84
      %p93 = scmp.eq.s32.totalorder %s38, 3
      %p94 = por %p92, %p93
      %p95 = scmp.ne.s32.totalorder %s84, %s85
      %p96 = scmp.eq.s32.totalorder %s38, 0
      %p97 = por %p95, %p96
      %p98 = scmp.ne.s32.totalorder %s84, %s85
      %p99 = scmp.eq.s32.totalorder %s39, 3
      %p100 = por %p98, %p99
      %p102 = scmp.ne.s32.totalorder %s85, %s101
      %p103 = scmp.eq.s32.totalorder %s39, 0
      %p104 = por %p102, %p103
      %s105 = ssub.s32 %s41, %s48
      %p106 = scmp.eq.s32.totalorder %s105, 0
      %s108 = sadd.s32 %s107, 1
      %s109 = scalar_select %p106, %s107, %s108
      %p112 = pneg %p106
      %p113 = scmp.eq.s32.totalorder %s33, 3
      %p114 = por %p112, %p113
      %p115 = scmp.ne.s32.totalorder %s107, %s110
      %p116 = scmp.eq.s32.totalorder %s33, 0
      %p117 = por %p115, %p116
      %p118 = scmp.ne.s32.totalorder %s107, %s110
      %p119 = scmp.eq.s32.totalorder %s38, 3
      %p120 = por %p118, %p119
      %p121 = scmp.ne.s32.totalorder %s110, %s111
      %p122 = scmp.eq.s32.totalorder %s38, 0
      %p123 = por %p121, %p122
      %p124 = scmp.ne.s32.totalorder %s110, %s111
      %p125 = scmp.eq.s32.totalorder %s39, 3
      %p126 = por %p124, %p125
      %p128 = scmp.ne.s32.totalorder %s111, %s127
      %p129 = scmp.eq.s32.totalorder %s39, 0
      %p130 = por %p128, %p129
      %s131 = ssub.s32 %s41, %s48
      %p132 = scmp.eq.s32.totalorder %s131, 0
      %s134 = sadd.s32 %s133, 1
      %s135 = scalar_select %p132, %s133, %s134
      %p138 = pneg %p132
      %p139 = scmp.eq.s32.totalorder %s33, 3
      %p140 = por %p138, %p139
      %p141 = scmp.ne.s32.totalorder %s133, %s136
      %p142 = scmp.eq.s32.totalorder %s33, 0
      %p143 = por %p141, %p142
      %p144 = scmp.ne.s32.totalorder %s133, %s136
      %p145 = scmp.eq.s32.totalorder %s38, 3
      %p146 = por %p144, %p145
      %p147 = scmp.ne.s32.totalorder %s136, %s137
      %p148 = scmp.eq.s32.totalorder %s38, 0
      %p149 = por %p147, %p148
      %p150 = scmp.ne.s32.totalorder %s136, %s137
      %p151 = scmp.eq.s32.totalorder %s39, 3
      %p152 = por %p150, %p151
      %p154 = scmp.ne.s32.totalorder %s137, %s153
      %p155 = scmp.eq.s32.totalorder %s39, 0
      %p156 = por %p154, %p155
      %s157 = ssub.s32 %s41, %s48
      %p158 = scmp.eq.s32.totalorder %s157, 0
      %s160 = sadd.s32 %s159, 1
      %s161 = scalar_select %p158, %s159, %s160
      %p164 = pneg %p158
      %p165 = scmp.eq.s32.totalorder %s33, 3
      %p166 = por %p164, %p165
      %p167 = scmp.ne.s32.totalorder %s159, %s162
      %p168 = scmp.eq.s32.totalorder %s33, 0
      %p169 = por %p167, %p168
      %p170 = scmp.ne.s32.totalorder %s159, %s162
      %p171 = scmp.eq.s32.totalorder %s38, 3
      %p172 = por %p170, %p171
      %p173 = scmp.ne.s32.totalorder %s162, %s163
      %p174 = scmp.eq.s32.totalorder %s38, 0
      %p175 = por %p173, %p174
      %p176 = scmp.ne.s32.totalorder %s162, %s163
      %p177 = scmp.eq.s32.totalorder %s39, 3
      %p178 = por %p176, %p177
      %p180 = scmp.ne.s32.totalorder %s163, %s179
      %p181 = scmp.eq.s32.totalorder %s39, 0
      %p182 = por %p180, %p181
      %s183 = ssub.s32 %s41, %s48
      %p184 = scmp.eq.s32.totalorder %s183, 0
      %s186 = sadd.s32 %s185, 1
      %s187 = scalar_select %p184, %s185, %s186
      %p190 = pneg %p184
      %p191 = scmp.eq.s32.totalorder %s33, 3
      %p192 = por %p190, %p191
      %p193 = scmp.ne.s32.totalorder %s185, %s188
      %p194 = scmp.eq.s32.totalorder %s33, 0
      %p195 = por %p193, %p194
      %p196 = scmp.ne.s32.totalorder %s185, %s188
      %p197 = scmp.eq.s32.totalorder %s38, 3
      %p198 = por %p196, %p197
      %p199 = scmp.ne.s32.totalorder %s188, %s189
      %p200 = scmp.eq.s32.totalorder %s38, 0
      %p201 = por %p199, %p200
      %p202 = scmp.ne.s32.totalorder %s188, %s189
      %p203 = scmp.eq.s32.totalorder %s39, 3
      %p204 = por %p202, %p203
      %p206 = scmp.ne.s32.totalorder %s189, %s205
      %p207 = scmp.eq.s32.totalorder %s39, 0
      %p208 = por %p206, %p207
      %s209 = ssub.s32 %s41, %s48
      %p210 = scmp.eq.s32.totalorder %s209, 0
      %s212 = sadd.s32 %s211, 1
      %s213 = scalar_select %p210, %s211, %s212
      %p216 = pneg %p210
      %p217 = scmp.eq.s32.totalorder %s33, 3
      %p218 = por %p216, %p217
      %p219 = scmp.ne.s32.totalorder %s211, %s214
      %p220 = scmp.eq.s32.totalorder %s33, 0
      %p221 = por %p219, %p220
      %p222 = scmp.ne.s32.totalorder %s211, %s214
      %p223 = scmp.eq.s32.totalorder %s38, 3
      %p224 = por %p222, %p223
      %p225 = scmp.ne.s32.totalorder %s214, %s215
      %p226 = scmp.eq.s32.totalorder %s38, 0
      %p227 = por %p225, %p226
      %p228 = scmp.ne.s32.totalorder %s214, %s215
      %p229 = scmp.eq.s32.totalorder %s39, 3
      %p230 = por %p228, %p229
      %p232 = scmp.ne.s32.totalorder %s215, %s231
      %p233 = scmp.eq.s32.totalorder %s39, 0
      %p234 = por %p232, %p233
      %s235 = ssub.s32 %s41, %s48
      %p236 = scmp.eq.s32.totalorder %s235, 0
      %s238 = sadd.s32 %s237, 1
      %s239 = scalar_select %p236, %s237, %s238
      %p242 = pneg %p236
      %p243 = scmp.eq.s32.totalorder %s33, 3
      %p244 = por %p242, %p243
      %p245 = scmp.ne.s32.totalorder %s237, %s240
      %p246 = scmp.eq.s32.totalorder %s33, 0
      %p247 = por %p245, %p246
      %p248 = scmp.ne.s32.totalorder %s237, %s240
      %p249 = scmp.eq.s32.totalorder %s38, 3
      %p250 = por %p248, %p249
      %p251 = scmp.ne.s32.totalorder %s240, %s241
      %p252 = scmp.eq.s32.totalorder %s38, 0
      %p253 = por %p251, %p252
      %p254 = scmp.ne.s32.totalorder %s240, %s241
      %p255 = scmp.eq.s32.totalorder %s39, 3
      %p256 = por %p254, %p255
      %p258 = scmp.ne.s32.totalorder %s241, %s257
      %p259 = scmp.eq.s32.totalorder %s39, 0
      %p260 = por %p258, %p259
      %s261 = ssub.s32 %s41, %s48
      %p262 = scmp.eq.s32.totalorder %s261, 0
      %s264 = sadd.s32 %s263, 1
      %s265 = scalar_select %p262, %s263, %s264
      %p268 = pneg %p262
      %p269 = scmp.eq.s32.totalorder %s33, 3
      %p270 = por %p268, %p269
      %p271 = scmp.ne.s32.totalorder %s263, %s266
      %p272 = scmp.eq.s32.totalorder %s33, 0
      %p273 = por %p271, %p272
      %p274 = scmp.ne.s32.totalorder %s263, %s266
      %p275 = scmp.eq.s32.totalorder %s38, 3
      %p276 = por %p274, %p275
      %p277 = scmp.ne.s32.totalorder %s266, %s267
      %p278 = scmp.eq.s32.totalorder %s38, 0
      %p279 = por %p277, %p278
      %p280 = scmp.ne.s32.totalorder %s266, %s267
      %p281 = scmp.eq.s32.totalorder %s39, 3
      %p282 = por %p280, %p281
      %p284 = scmp.ne.s32.totalorder %s267, %s283
      %p285 = scmp.eq.s32.totalorder %s39, 0
      %p286 = por %p284, %p285
      %s287 = ssub.s32 %s41, %s48
      %p288 = scmp.eq.s32.totalorder %s287, 0
      %s290 = sadd.s32 %s289, 1
      %s291 = scalar_select %p288, %s289, %s290
      %p294 = pneg %p288
      %p295 = scmp.eq.s32.totalorder %s33, 3
      %p296 = por %p294, %p295
      %p297 = scmp.ne.s32.totalorder %s289, %s292
      %p298 = scmp.eq.s32.totalorder %s33, 0
      %p299 = por %p297, %p298
      %p300 = scmp.ne.s32.totalorder %s289, %s292
      %p301 = scmp.eq.s32.totalorder %s38, 3
      %p302 = por %p300, %p301
      %p303 = scmp.ne.s32.totalorder %s292, %s293
      %p304 = scmp.eq.s32.totalorder %s38, 0
      %p305 = por %p303, %p304
      %p306 = scmp.ne.s32.totalorder %s292, %s293
      %p307 = scmp.eq.s32.totalorder %s39, 3
      %p308 = por %p306, %p307
      %p310 = scmp.ne.s32.totalorder %s293, %s309
      %p311 = scmp.eq.s32.totalorder %s39, 0
      %p312 = por %p310, %p311
      %s313 = ssub.s32 %s41, %s48
      %p314 = scmp.eq.s32.totalorder %s313, 0
      %s316 = sadd.s32 %s315, 1
      %s317 = scalar_select %p314, %s315, %s316
      %p320 = pneg %p314
      %p321 = scmp.eq.s32.totalorder %s33, 3
      %p322 = por %p320, %p321
      %p323 = scmp.ne.s32.totalorder %s315, %s318
      %p324 = scmp.eq.s32.totalorder %s33, 0
      %p325 = por %p323, %p324
      %p326 = scmp.ne.s32.totalorder %s315, %s318
      %p327 = scmp.eq.s32.totalorder %s38, 3
      %p328 = por %p326, %p327
      %p329 = scmp.ne.s32.totalorder %s318, %s319
      %p330 = scmp.eq.s32.totalorder %s38, 0
      %p331 = por %p329, %p330
      %p332 = scmp.ne.s32.totalorder %s318, %s319
      %p333 = scmp.eq.s32.totalorder %s39, 3
      %p334 = por %p332, %p333
      %p336 = scmp.ne.s32.totalorder %s319, %s335
      %p337 = scmp.eq.s32.totalorder %s39, 0
      %p338 = por %p336, %p337
      %s339 = ssub.s32 %s41, %s48
      %p340 = scmp.eq.s32.totalorder %s339, 0
      %s342 = sadd.s32 %s341, 1
      %s343 = scalar_select %p340, %s341, %s342
      %p346 = pneg %p340
      %p347 = scmp.eq.s32.totalorder %s33, 3
      %p348 = por %p346, %p347
      %p349 = scmp.ne.s32.totalorder %s341, %s344
      %p350 = scmp.eq.s32.totalorder %s33, 0
      %p351 = por %p349, %p350
      %p352 = scmp.ne.s32.totalorder %s341, %s344
      %p353 = scmp.eq.s32.totalorder %s38, 3
      %p354 = por %p352, %p353
      %p355 = scmp.ne.s32.totalorder %s344, %s345
      %p356 = scmp.eq.s32.totalorder %s38, 0
      %p357 = por %p355, %p356
      %p358 = scmp.ne.s32.totalorder %s344, %s345
      %p359 = scmp.eq.s32.totalorder %s39, 3
      %p360 = por %p358, %p359
      %p362 = scmp.ne.s32.totalorder %s345, %s361
      %p363 = scmp.eq.s32.totalorder %s39, 0
      %p364 = por %p362, %p363
      %s365 = ssub.s32 %s41, %s48
      %p366 = scmp.eq.s32.totalorder %s365, 0
      %s368 = sadd.s32 %s367, 1
      %s369 = scalar_select %p366, %s367, %s368
      %p372 = pneg %p366
      %p373 = scmp.eq.s32.totalorder %s33, 3
      %p374 = por %p372, %p373
      %p375 = scmp.ne.s32.totalorder %s367, %s370
      %p376 = scmp.eq.s32.totalorder %s33, 0
      %p377 = por %p375, %p376
      %p378 = scmp.ne.s32.totalorder %s367, %s370
      %p379 = scmp.eq.s32.totalorder %s38, 3
      %p380 = por %p378, %p379
      %p381 = scmp.ne.s32.totalorder %s370, %s371
      %p382 = scmp.eq.s32.totalorder %s38, 0
      %p383 = por %p381, %p382
      %p384 = scmp.ne.s32.totalorder %s370, %s371
      %p385 = scmp.eq.s32.totalorder %s39, 3
      %p386 = por %p384, %p385
      %p388 = scmp.ne.s32.totalorder %s371, %s387
      %p389 = scmp.eq.s32.totalorder %s39, 0
      %p390 = por %p388, %p389
      %s392 = sadd.s32 %s391, 1
      %p395 = scmp.eq.s32.totalorder %s33, 3
      %p396 = scmp.ne.s32.totalorder %s391, %s393
      %p397 = scmp.eq.s32.totalorder %s33, 0
      %p398 = por %p396, %p397
      %p399 = scmp.ne.s32.totalorder %s391, %s393
      %p400 = scmp.eq.s32.totalorder %s38, 3
      %p401 = por %p399, %p400
      %p402 = scmp.ne.s32.totalorder %s393, %s394
      %p403 = scmp.eq.s32.totalorder %s38, 0
      %p404 = por %p402, %p403
      %p405 = scmp.ne.s32.totalorder %s393, %s394
      %p406 = scmp.eq.s32.totalorder %s39, 3
      %p407 = por %p405, %p406
      %p409 = scmp.ne.s32.totalorder %s394, %s408
      %p410 = scmp.eq.s32.totalorder %s39, 0
      %p411 = por %p409, %p410
      %s413 = sadd.s32 %s412, 1
      %p416 = scmp.eq.s32.totalorder %s33, 3
      %p417 = scmp.ne.s32.totalorder %s412, %s414
      %p418 = scmp.eq.s32.totalorder %s33, 0
      %p419 = por %p417, %p418
      %p420 = scmp.ne.s32.totalorder %s412, %s414
      %p421 = scmp.eq.s32.totalorder %s38, 3
      %p422 = por %p420, %p421
      %p423 = scmp.ne.s32.totalorder %s414, %s415
      %p424 = scmp.eq.s32.totalorder %s38, 0
      %p425 = por %p423, %p424
      %p426 = scmp.ne.s32.totalorder %s414, %s415
      %p427 = scmp.eq.s32.totalorder %s39, 3
      %p428 = por %p426, %p427
      %p430 = scmp.ne.s32.totalorder %s415, %s429
      %p431 = scmp.eq.s32.totalorder %s39, 0
      %p432 = por %p430, %p431
      %s433 = ssub.s32 %s40, %s52
      %p434 = scmp.eq.s32.totalorder %s433, 0
      %s436 = sadd.s32 %s435, 1
      %s437 = scalar_select %p434, %s435, %s436
      %p440 = pneg %p434
      %p441 = scmp.eq.s32.totalorder %s33, 3
      %p442 = por %p440, %p441
      %p443 = scmp.ne.s32.totalorder %s435, %s438
      %p444 = scmp.eq.s32.totalorder %s33, 0
      %p445 = por %p443, %p444
      %p446 = scmp.ne.s32.totalorder %s435, %s438
      %p447 = scmp.eq.s32.totalorder %s38, 3
      %p448 = por %p446, %p447
      %p449 = scmp.ne.s32.totalorder %s438, %s439
      %p450 = scmp.eq.s32.totalorder %s38, 0
      %p451 = por %p449, %p450
      %p452 = scmp.ne.s32.totalorder %s438, %s439
      %p453 = scmp.eq.s32.totalorder %s39, 3
      %p454 = por %p452, %p453
      %p456 = scmp.ne.s32.totalorder %s439, %s455
      %p457 = scmp.eq.s32.totalorder %s39, 0
      %p458 = por %p456, %p457
      %p459 = scmp.le.s32.totalorder 1, %s33
      %p460 = scmp.lt.s32.totalorder %s33, 5
      %p461 = pnand %p459, %p460
      %p462 = pneg %p461
      // Predicated region
      $region9: #{tpu_custom_call.1} parent=5 // pred_check
        _
      $region10: #{tpu_custom_call.1} parent=5 // pred_check_branch
        %464 = sbr.rel (%p461) target = $region12
      $region11: #{tpu_custom_call.1} parent=5 // pred_region
        %s465 = ssub.s32 %s33, 1
        // Predicated region
        $region13: #{tpu_custom_call.1} parent=11 // pred_check
          %p466 = pneg %p404
        $region14: #{tpu_custom_call.1} parent=11 // pred_check_branch
          %468 = sbr.rel (%p466) target = $region16
        $region15: #{tpu_custom_call.1} parent=11 // pred_region
          _
        $region16: #{tpu_custom_call.1} parent=11 // pred_fallthru
          _
        // Predicated region
        $region17: #{tpu_custom_call.1} parent=11 // pred_check
          %p469 = pneg %p425
        $region18: #{tpu_custom_call.1} parent=11 // pred_check_branch
          %471 = sbr.rel (%p469) target = $region20
        $region19: #{tpu_custom_call.1} parent=11 // pred_region
          _
        $region20: #{tpu_custom_call.1} parent=11 // pred_fallthru
          _
      $region12: #{tpu_custom_call.1} parent=5 // pred_fallthru
        _
      %p472 = scmp.lt.s32.totalorder %s33, 4
      // Predicated region
      $region21: #{tpu_custom_call.1} parent=5 // pred_check
        %p473 = pneg %p472
      $region22: #{tpu_custom_call.1} parent=5 // pred_check_branch
        %475 = sbr.rel (%p473) target = $region24
      $region23: #{tpu_custom_call.1} parent=5 // pred_region
        // Predicated region
        $region25: #{tpu_custom_call.1} parent=23 // pred_check
          %p476 = pneg %p65
        $region26: #{tpu_custom_call.1} parent=23 // pred_check_branch
          %478 = sbr.rel (%p476) target = $region28
        $region27: #{tpu_custom_call.1} parent=23 // pred_region
          %p479 = scmp.lt.s32.totalorder %s40, 1
          %s480 = scalar_select %p479, %s40, 1
          %s481 = smul.addr %s480, 8
          %s482 = scalar_lea.vmem %s1, %s481
        $region28: #{tpu_custom_call.1} parent=23 // pred_fallthru
          _
        // Predicated region
        $region29: #{tpu_custom_call.1} parent=23 // pred_check
          %p483 = pneg %p91
        $region30: #{tpu_custom_call.1} parent=23 // pred_check_branch
          %485 = sbr.rel (%p483) target = $region32
        $region31: #{tpu_custom_call.1} parent=23 // pred_region
          %p486 = scmp.lt.s32.totalorder %s41, 1
          %s487 = scalar_select %p486, %s41, 1
          %s488 = scalar_lea.vmem %s2, %s487
        $region32: #{tpu_custom_call.1} parent=23 // pred_fallthru
          _
        // Predicated region
        $region33: #{tpu_custom_call.1} parent=23 // pred_check
          %p489 = pneg %p117
        $region34: #{tpu_custom_call.1} parent=23 // pred_check_branch
          %491 = sbr.rel (%p489) target = $region36
        $region35: #{tpu_custom_call.1} parent=23 // pred_region
          %p492 = scmp.lt.s32.totalorder %s41, 1
          %s493 = scalar_select %p492, %s41, 1
          %s494 = scalar_lea.vmem %s3, %s493
        $region36: #{tpu_custom_call.1} parent=23 // pred_fallthru
          _
        // Predicated region
        $region37: #{tpu_custom_call.1} parent=23 // pred_check
          %p495 = pneg %p143
        $region38: #{tpu_custom_call.1} parent=23 // pred_check_branch
          %497 = sbr.rel (%p495) target = $region40
        $region39: #{tpu_custom_call.1} parent=23 // pred_region
          %p498 = scmp.lt.s32.totalorder %s41, 1
          %s499 = scalar_select %p498, %s41, 1
          %s500 = smul.addr %s499, 4
          %s501 = smul.addr %s500, 4
          %s502 = scalar_lea.vmem %s4, %s501
        $region40: #{tpu_custom_call.1} parent=23 // pred_fallthru
          _
        // Predicated region
        $region41: #{tpu_custom_call.1} parent=23 // pred_check
          %p503 = pneg %p169
        $region42: #{tpu_custom_call.1} parent=23 // pred_check_branch
          %505 = sbr.rel (%p503) target = $region44
        $region43: #{tpu_custom_call.1} parent=23 // pred_region
          %p506 = scmp.lt.s32.totalorder %s41, 1
          %s507 = scalar_select %p506, %s41, 1
          %s508 = scalar_lea.vmem %s5, %s507
        $region44: #{tpu_custom_call.1} parent=23 // pred_fallthru
          _
        // Predicated region
        $region45: #{tpu_custom_call.1} parent=23 // pred_check
          %p509 = pneg %p195
        $region46: #{tpu_custom_call.1} parent=23 // pred_check_branch
          %511 = sbr.rel (%p509) target = $region48
        $region47: #{tpu_custom_call.1} parent=23 // pred_region
          %p512 = scmp.lt.s32.totalorder %s41, 1
          %s513 = scalar_select %p512, %s41, 1
          %s514 = smul.addr %s513, 4
          %s515 = smul.addr %s514, 4
          %s516 = scalar_lea.vmem %s6, %s515
        $region48: #{tpu_custom_call.1} parent=23 // pred_fallthru
          _
        // Predicated region
        $region49: #{tpu_custom_call.1} parent=23 // pred_check
          %p517 = pneg %p221
        $region50: #{tpu_custom_call.1} parent=23 // pred_check_branch
          %519 = sbr.rel (%p517) target = $region52
        $region51: #{tpu_custom_call.1} parent=23 // pred_region
          %p520 = scmp.lt.s32.totalorder %s41, 1
          %s521 = scalar_select %p520, %s41, 1
          %s522 = scalar_lea.vmem %s7, %s521
        $region52: #{tpu_custom_call.1} parent=23 // pred_fallthru
          _
        // Predicated region
        $region53: #{tpu_custom_call.1} parent=23 // pred_check
          %p523 = pneg %p247
        $region54: #{tpu_custom_call.1} parent=23 // pred_check_branch
          %525 = sbr.rel (%p523) target = $region56
        $region55: #{tpu_custom_call.1} parent=23 // pred_region
          %p526 = scmp.lt.s32.totalorder %s41, 1
          %s527 = scalar_select %p526, %s41, 1
          %s528 = scalar_lea.vmem %s8, %s527
        $region56: #{tpu_custom_call.1} parent=23 // pred_fallthru
          _
        // Predicated region
        $region57: #{tpu_custom_call.1} parent=23 // pred_check
          %p529 = pneg %p273
        $region58: #{tpu_custom_call.1} parent=23 // pred_check_branch
          %531 = sbr.rel (%p529) target = $region60
        $region59: #{tpu_custom_call.1} parent=23 // pred_region
          %p532 = scmp.lt.s32.totalorder %s41, 1
          %s533 = scalar_select %p532, %s41, 1
          %s534 = scalar_lea.vmem %s9, %s533
        $region60: #{tpu_custom_call.1} parent=23 // pred_fallthru
          _
        // Predicated region
        $region61: #{tpu_custom_call.1} parent=23 // pred_check
          %p535 = pneg %p299
        $region62: #{tpu_custom_call.1} parent=23 // pred_check_branch
          %537 = sbr.rel (%p535) target = $region64
        $region63: #{tpu_custom_call.1} parent=23 // pred_region
          %p538 = scmp.lt.s32.totalorder %s41, 1
          %s539 = scalar_select %p538, %s41, 1
          %s540 = smul.addr %s539, 4
          %s541 = smul.addr %s540, 4
          %s542 = scalar_lea.vmem %s10, %s541
        $region64: #{tpu_custom_call.1} parent=23 // pred_fallthru
          _
        // Predicated region
        $region65: #{tpu_custom_call.1} parent=23 // pred_check
          %p543 = pneg %p325
        $region66: #{tpu_custom_call.1} parent=23 // pred_check_branch
          %545 = sbr.rel (%p543) target = $region68
        $region67: #{tpu_custom_call.1} parent=23 // pred_region
          %p546 = scmp.lt.s32.totalorder %s41, 1
          %s547 = scalar_select %p546, %s41, 1
          %s548 = scalar_lea.vmem %s11, %s547
        $region68: #{tpu_custom_call.1} parent=23 // pred_fallthru
          _
        // Predicated region
        $region69: #{tpu_custom_call.1} parent=23 // pred_check
          %p549 = pneg %p351
        $region70: #{tpu_custom_call.1} parent=23 // pred_check_branch
          %551 = sbr.rel (%p549) target = $region72
        $region71: #{tpu_custom_call.1} parent=23 // pred_region
          %p552 = scmp.lt.s32.totalorder %s41, 1
          %s553 = scalar_select %p552, %s41, 1
          %s554 = smul.addr %s553, 16
          %s555 = smul.addr %s554, 4
          %s556 = scalar_lea.vmem %s12, %s555
        $region72: #{tpu_custom_call.1} parent=23 // pred_fallthru
          _
        // Predicated region
        $region73: #{tpu_custom_call.1} parent=23 // pred_check
          %p557 = pneg %p377
        $region74: #{tpu_custom_call.1} parent=23 // pred_check_branch
          %559 = sbr.rel (%p557) target = $region76
        $region75: #{tpu_custom_call.1} parent=23 // pred_region
          %p560 = scmp.lt.s32.totalorder %s41, 1
          %s561 = scalar_select %p560, %s41, 1
          %s562 = scalar_lea.vmem %s13, %s561
        $region76: #{tpu_custom_call.1} parent=23 // pred_fallthru
          _
      $region24: #{tpu_custom_call.1} parent=5 // pred_fallthru
        _
      %p563 = scmp.le.s32.totalorder 1, %s33
      %p564 = scmp.lt.s32.totalorder %s33, 5
      %p565 = pnand %p563, %p564
      %p566 = pneg %p565
      // Predicated region
      $region77: #{tpu_custom_call.1} parent=5 // pred_check
        _
      $region78: #{tpu_custom_call.1} parent=5 // pred_check_branch
        %568 = sbr.rel (%p565) target = $region80
      $region79: #{tpu_custom_call.1} parent=5 // pred_region
        %s569 = ssub.s32 %s33, 1
        %p570 = scmp.lt.s32.totalorder %s42, 1
        %s571 = scalar_select %p570, %s42, 1
        %s572 = smul.addr %s571, 8
        %s573 = scalar_lea.vmem %s1, %s572
        %p574 = pneg %p71
        %p575 = pneg %p68
        %p576 = scmp.lt.s32.totalorder %s43, 1
        %s577 = scalar_select %p576, %s43, 1
        %s578 = scalar_lea.vmem %s2, %s577
        %p579 = pneg %p97
        %p580 = pneg %p94
        %p581 = scmp.lt.s32.totalorder %s43, 1
        %s582 = scalar_select %p581, %s43, 1
        %s583 = scalar_lea.vmem %s3, %s582
        %p584 = pneg %p123
        %p585 = pneg %p120
        %p586 = scmp.lt.s32.totalorder %s43, 1
        %s587 = scalar_select %p586, %s43, 1
        %s588 = smul.addr %s587, 4
        %s589 = smul.addr %s588, 4
        %s590 = scalar_lea.vmem %s4, %s589
        %p591 = pneg %p149
        %p592 = pneg %p146
        %p593 = scmp.lt.s32.totalorder %s43, 1
        %s594 = scalar_select %p593, %s43, 1
        %s595 = scalar_lea.vmem %s5, %s594
        %p596 = pneg %p175
        %p597 = pneg %p172
        %p598 = scmp.lt.s32.totalorder %s43, 1
        %s599 = scalar_select %p598, %s43, 1
        %s600 = smul.addr %s599, 4
        %s601 = smul.addr %s600, 4
        %s602 = scalar_lea.vmem %s6, %s601
        %p603 = pneg %p201
        %p604 = pneg %p198
        %p605 = scmp.lt.s32.totalorder %s43, 1
        %s606 = scalar_select %p605, %s43, 1
        %s607 = scalar_lea.vmem %s7, %s606
        %p608 = pneg %p227
        %p609 = pneg %p224
        %p610 = scmp.lt.s32.totalorder %s43, 1
        %s611 = scalar_select %p610, %s43, 1
        %s612 = scalar_lea.vmem %s8, %s611
        %p613 = pneg %p253
        %p614 = pneg %p250
        %p615 = scmp.lt.s32.totalorder %s43, 1
        %s616 = scalar_select %p615, %s43, 1
        %s617 = scalar_lea.vmem %s9, %s616
        %p618 = pneg %p279
        %p619 = pneg %p276
        %p620 = scmp.lt.s32.totalorder %s43, 1
        %s621 = scalar_select %p620, %s43, 1
        %s622 = smul.addr %s621, 4
        %s623 = smul.addr %s622, 4
        %s624 = scalar_lea.vmem %s10, %s623
        %p625 = pneg %p305
        %p626 = pneg %p302
        %p627 = scmp.lt.s32.totalorder %s43, 1
        %s628 = scalar_select %p627, %s43, 1
        %s629 = scalar_lea.vmem %s11, %s628
        %p630 = pneg %p331
        %p631 = pneg %p328
        %p632 = scmp.lt.s32.totalorder %s43, 1
        %s633 = scalar_select %p632, %s43, 1
        %s634 = smul.addr %s633, 16
        %s635 = smul.addr %s634, 4
        %s636 = scalar_lea.vmem %s12, %s635
        %p637 = pneg %p357
        %p638 = pneg %p354
        %p639 = scmp.lt.s32.totalorder %s43, 1
        %s640 = scalar_select %p639, %s43, 1
        %s641 = scalar_lea.vmem %s13, %s640
        %p642 = pneg %p383
        %p643 = pneg %p380
        %p644 = pneg %p404
        %p645 = pneg %p401
        %p646 = pneg %p425
        %p647 = pneg %p422
        %p648 = pneg %p451
        %p649 = pneg %p448
        %s650 = sand.u32 %s438, 1
        %s651 = scalar_lea.sflag [#allocation6], %s650
        %s652 = sand.u32 %s438, 1
        %s653 = smul.addr %s652, 8
        %s654 = scalar_lea.vmem [#allocation5], %s653
        %p655 = scmp.lt.s32.totalorder %s42, 1
        %s656 = scalar_select %p655, %s42, 1
        %s657 = smul.addr %s656, 8
        %s658 = scalar_lea.vmem %s1, %s657
        %p659 = scmp.lt.s32.totalorder %s43, 1
        %s660 = scalar_select %p659, %s43, 1
        %s661 = scalar_lea.vmem %s2, %s660
        %p662 = scmp.lt.s32.totalorder %s43, 1
        %s663 = scalar_select %p662, %s43, 1
        %s664 = scalar_lea.vmem %s3, %s663
        %p665 = scmp.lt.s32.totalorder %s43, 1
        %s666 = scalar_select %p665, %s43, 1
        %s667 = smul.addr %s666, 4
        %s668 = smul.addr %s667, 4
        %s669 = scalar_lea.vmem %s4, %s668
        %p670 = scmp.lt.s32.totalorder %s43, 1
        %s671 = scalar_select %p670, %s43, 1
        %s672 = scalar_lea.vmem %s5, %s671
        %p673 = scmp.lt.s32.totalorder %s43, 1
        %s674 = scalar_select %p673, %s43, 1
        %s675 = smul.addr %s674, 4
        %s676 = smul.addr %s675, 4
        %s677 = scalar_lea.vmem %s6, %s676
        %p678 = scmp.lt.s32.totalorder %s43, 1
        %s679 = scalar_select %p678, %s43, 1
        %s680 = scalar_lea.vmem %s7, %s679
        %p681 = scmp.lt.s32.totalorder %s43, 1
        %s682 = scalar_select %p681, %s43, 1
        %s683 = scalar_lea.vmem %s8, %s682
        %p684 = scmp.lt.s32.totalorder %s43, 1
        %s685 = scalar_select %p684, %s43, 1
        %s686 = scalar_lea.vmem %s9, %s685
        %p687 = scmp.lt.s32.totalorder %s43, 1
        %s688 = scalar_select %p687, %s43, 1
        %s689 = smul.addr %s688, 4
        %s690 = smul.addr %s689, 4
        %s691 = scalar_lea.vmem %s10, %s690
        %p692 = scmp.lt.s32.totalorder %s43, 1
        %s693 = scalar_select %p692, %s43, 1
        %s694 = scalar_lea.vmem %s11, %s693
        %p695 = scmp.lt.s32.totalorder %s43, 1
        %s696 = scalar_select %p695, %s43, 1
        %s697 = smul.addr %s696, 16
        %s698 = smul.addr %s697, 4
        %s699 = scalar_lea.vmem %s12, %s698
        %p700 = scmp.lt.s32.totalorder %s43, 1
        %s701 = scalar_select %p700, %s43, 1
        %s702 = scalar_lea.vmem %s13, %s701
        %p704 = scmp.eq.s32.totalorder %s43, 0
        // Predicated region
        $region81: #{tpu_custom_call.1} parent=79 // pred_check
          %p705 = pneg %p704
        $region82: #{tpu_custom_call.1} parent=79 // pred_check_branch
          %707 = sbr.rel (%p705) target = $region84
        $region83: #{tpu_custom_call.1} parent=79 // pred_region
          %v708 = vld [vmem:[%s658] sm:$0xff]
          %vm709 = vcmask 261120
          %710 = vst.msk [vmem:[#allocation2] sm:$0xff] %vm709, %v708
        $region84: #{tpu_custom_call.1} parent=79 // pred_fallthru
          _
        %v711 = vld [vmem:[#allocation2] sm:$0xff]
        %v712 = vlaneseq
        %v713 = vand.u32 %v712, 127
        %s714 = sld [smem:[#allocation4 + %s42]]
        %v715 = vstv %s714
        %vm716 = vcmp.lt.s32.totalorder %v713, %v715
        %v717 = vsel %vm716, 0.0, -1e+09
        %v718 = vld [vmem:[%s661] sm:$0x1]
        %v719 = vld [vmem:[%s664] sm:$0x1]
        %vm720 = vcmask 261120
        %v721 = vsel %vm720, %v711, 0.0
        %722 = vadd.xlane.f32.xlu0 %v721
        %v723 = vpop.xlane.xlu0 %722
        %v724 = vrcp.pop 32.0
        %v725 = vmul.f32 32.0, %v724
        %v726 = vsub.f32 1.0, %v725
        %v727 = vmul.f32 %v724, %v726
        %v728 = vadd.f32 %v724, %v727
        %vm729 = vweird.f32 %v724
        %v730 = vsel %vm729, %v724, %v728
        %v731 = vmul.f32 %v723, %v730
        %v732 = vsub.f32 %v711, %v731
        %v733 = vmul.f32 %v732, %v732
        %v734 = vsel %vm720, %v733, 0.0
        %735 = vadd.xlane.f32.xlu0 %v734
        %v736 = vpop.xlane.xlu0 %735
        %v737 = vrcp.pop 31.0
        %v738 = vmul.f32 31.0, %v737
        %v739 = vsub.f32 1.0, %v738
        %v740 = vmul.f32 %v737, %v739
        %v741 = vadd.f32 %v737, %v740
        %vm742 = vweird.f32 %v737
        %v743 = vsel %vm742, %v737, %v741
        %v744 = vmul.f32 %v736, %v743
        %v745 = vrsqrt.pop %v744
        %v746 = vmul.f32 %v745, %v744
        %v747 = vmul.f32 %v746, %v745
        %v748 = vmul.f32 0.5, %v747
        %v749 = vsub.f32 1.5, %v748
        %v750 = vmul.f32 %v745, %v749
        %v751 = vmul.f32 %v744, %v750
        %vm752 = vcmp.eq.f32.partialorder %v744, inf
        %v753 = vsel %vm752, %v744, %v751
        %vm754 = vcmp.eq.f32.partialorder %v744, 0.0
        %v755 = vand.u32 %v744, 2147483648
        %v756 = vsel %vm754, %v755, %v753
        %v758 = vperm.slane %v718, 0
        %v760 = vmul.f32 %v758, %v732
        %v761 = vadd.f32 %v756, 1e-06
        %v762 = vrcp.pop %v761
        %v763 = vmul.f32 %v761, %v762
        %v764 = vsub.f32 1.0, %v763
        %v765 = vmul.f32 %v762, %v764
        %v766 = vadd.f32 %v762, %v765
        %vm767 = vweird.f32 %v761
        %vm768 = vweird.f32 %v762
        %vm769 = vmor %vm767, %vm768
        %v770 = vsel %vm769, %v762, %v766
        %v771 = vand.u32 2147483647, %v761
        %vm772 = vcmp.eq.f32.partialorder %v771, 8.507059e+37
        %v773 = vand.u32 %v761, 2147483648
        %v774 = vor.u32 1.1754944e-38, %v773
        %v775 = vsel %vm772, %v774, %v770
        %v776 = vmul.f32 %v760, %v775
        %v778 = vperm.slane %v719, 0
        %v780 = vadd.f32 %v776, %v778
        %v781 = vpack.c.bf16 %v780, %v780
        %v782 = vld [vmem:[%s669] sm:$0xf]
        %v783 = vld [vmem:[%s669 + $0x4] sm:$0xf]
        %v784 = vld [vmem:[%s669 + $0x8] sm:$0xf]
        %v785 = vld [vmem:[%s669 + $0xc] sm:$0xf]
        %v786 = vld [vmem:[%s672] sm:$0x1]
        %v788 = vperm.slane %v786, 0
        %v794 = vunpack.c.l.b16 %v782
        %v795 = vunpack.c.l.b16 %v783
        %v796 = vunpack.c.l.b16 %v784
        %v797 = vunpack.c.l.b16 %v785
        %v798 = vpack.c.b16 %v795, %v794
        %v799 = vpack.c.b16 %v797, %v796
        %v803 = vsel %vm720, %v781, 0
        %805 = vmatpush.bf16.msra.mxu0 0
        %806 = vmatpush.bf16.msra.mxu0 0
        %807 = vmatpush.bf16.msra.mxu0 0
        %808 = vmatpush.bf16.msra.mxu0 0
        %809 = vmatpush.bf16.msra.mxu0 0
        %810 = vmatpush.bf16.msra.mxu0 0
        %811 = vmatpush.bf16.msra.mxu0 %v799
        %812 = vmatpush.bf16.msra.mxu0 %v798
        %813 = vmatmul.bf16.gmra.mxu0 %v803
        %v814 = vpop.f32.mrf.mxu0
        %v815 = vadd.f32 %v788, %v814
        %v816 = vpop.f32.mrf.mxu0
        %817 = vdwg.mxu0
        %v818 = vmul.f32 %v815, 0.35355338
        %820 = vrot.lane.b32.xlu0 %v818, 120
        %v821 = vpop.permute.xlu0 %820
        %823 = vrot.lane.b32.xlu0 %v818, 112
        %v824 = vpop.permute.xlu0 %823
        %826 = vrot.lane.b32.xlu0 %v818, 104
        %v827 = vpop.permute.xlu0 %826
        %v829 = vrot.slane %v824, 4
        %vm830 = vcmask 1047556
        %v831 = vsel %vm830, %v829, %v818
        %v832 = vrot.slane %v818, 4
        %v833 = vsel %vm830, %v824, %v832
        %v835 = vunpack.c.l.s4 1983009808
        %v836 = vunpack.c.0.s8 %v835
        %v837 = vperm.slane %v831, %v836
        %v839 = vunpack.c.l.s4 1983009808
        %v840 = vunpack.c.0.s8 %v839
        %v841 = vperm.slane %v833, %v840
        %v842 = vrot.slane %v827, 4
        %v843 = vsel %vm830, %v842, %v821
        %v844 = vrot.slane %v821, 4
        %v845 = vsel %vm830, %v827, %v844
        %v847 = vunpack.c.l.s4 1983009808
        %v848 = vunpack.c.0.s8 %v847
        %v849 = vperm.slane %v843, %v848
        %v851 = vunpack.c.l.s4 1983009808
        %v852 = vunpack.c.0.s8 %v851
        %v853 = vperm.slane %v845, %v852
        %v854 = vrot.slane %v849, 4
        %v855 = vsel %vm830, %v854, %v837
        %v856 = vrot.slane %v837, 4
        %v857 = vsel %vm830, %v849, %v856
        %v859 = vunpack.c.l.s4 1934713408
        %v860 = vunpack.c.0.s8 %v859
        %v861 = vperm.slane %v855, %v860
        %v863 = vunpack.c.l.s4 1934713408
        %v864 = vunpack.c.0.s8 %v863
        %v865 = vperm.slane %v857, %v864
        %v866 = vrot.slane %v853, 4
        %v867 = vsel %vm830, %v866, %v841
        %v868 = vrot.slane %v841, 4
        %v869 = vsel %vm830, %v853, %v868
        %v871 = vunpack.c.l.s4 1934713408
        %v872 = vunpack.c.0.s8 %v871
        %v873 = vperm.slane %v867, %v872
        %v875 = vunpack.c.l.s4 1934713408
        %v876 = vunpack.c.0.s8 %v875
        %v877 = vperm.slane %v869, %v876
        %v878 = vrot.slane %v861, 4
        %v879 = vsel %vm830, 0.0, %v878
        %v880 = vrot.slane %v865, 4
        %v881 = vsel %vm830, 0.0, %v880
        %v882 = vrot.slane %v873, 4
        %v883 = vsel %vm830, 0.0, %v882
        %v884 = vrot.slane %v877, 4
        %v885 = vsel %vm830, 0.0, %v884
        %v886 = vsel %vm830, %v880, %v861
        %v888 = vunpack.c.l.s4 1983009808
        %v889 = vunpack.c.0.s8 %v888
        %v890 = vperm.slane %v886, %v889
        %v891 = vrot.slane %v881, 4
        %v892 = vsel %vm830, %v891, %v879
        %v894 = vunpack.c.l.s4 1983009808
        %v895 = vunpack.c.0.s8 %v894
        %v896 = vperm.slane %v892, %v895
        %v897 = vsel %vm830, %v884, %v873
        %v899 = vunpack.c.l.s4 1983009808
        %v900 = vunpack.c.0.s8 %v899
        %v901 = vperm.slane %v897, %v900
        %v902 = vrot.slane %v885, 4
        %v903 = vsel %vm830, %v902, %v883
        %v905 = vunpack.c.l.s4 1983009808
        %v906 = vunpack.c.0.s8 %v905
        %v907 = vperm.slane %v903, %v906
        %v908 = vrot.slane %v896, 4
        %v909 = vsel %vm830, %v908, %v890
        %v910 = vrot.slane %v890, 4
        %v911 = vsel %vm830, %v896, %v910
        %v913 = vunpack.c.l.s4 1934713408
        %v914 = vunpack.c.0.s8 %v913
        %v915 = vperm.slane %v909, %v914
        %v917 = vunpack.c.l.s4 1934713408
        %v918 = vunpack.c.0.s8 %v917
        %v919 = vperm.slane %v911, %v918
        %v920 = vrot.slane %v907, 4
        %v921 = vsel %vm830, %v920, %v901
        %v922 = vrot.slane %v901, 4
        %v923 = vsel %vm830, %v907, %v922
        %v925 = vunpack.c.l.s4 1934713408
        %v926 = vunpack.c.0.s8 %v925
        %v927 = vperm.slane %v921, %v926
        %v929 = vunpack.c.l.s4 1934713408
        %v930 = vunpack.c.0.s8 %v929
        %v931 = vperm.slane %v923, %v930
        %v932 = vrot.slane %v927, 4
        %v933 = vsel %vm830, %v932, %v915
        %v934 = vrot.slane %v915, 4
        %v935 = vsel %vm830, %v927, %v934
        %v936 = vrot.slane %v931, 4
        %v937 = vsel %vm830, %v936, %v919
        %v938 = vrot.slane %v919, 4
        %v939 = vsel %vm830, %v931, %v938
        %v940 = vpack.c.bf16 %v933, %v933
        %v941 = vpack.c.bf16 %v935, %v935
        %v942 = vpack.c.bf16 %v937, %v937
        %v943 = vpack.c.bf16 %v939, %v939
        %945 = vrot.lane.b32.xlu0 %v815, 120
        %v946 = vpop.permute.xlu0 %945
        %947 = vrot.lane.b32.xlu0 %v815, 112
        %v948 = vpop.permute.xlu0 %947
        %949 = vrot.lane.b32.xlu0 %v815, 104
        %v950 = vpop.permute.xlu0 %949
        %951 = vrot.lane.b32.xlu0 %v815, 96
        %v952 = vpop.permute.xlu0 %951
        %953 = vrot.lane.b32.xlu0 %v946, 96
        %v954 = vpop.permute.xlu0 %953
        %955 = vrot.lane.b32.xlu0 %v948, 96
        %v956 = vpop.permute.xlu0 %955
        %957 = vrot.lane.b32.xlu0 %v950, 96
        %v958 = vpop.permute.xlu0 %957
        %v963 = vrot.slane %v956, 4
        %v964 = vsel %vm830, %v963, %v952
        %v965 = vrot.slane %v952, 4
        %v966 = vsel %vm830, %v956, %v965
        %v968 = vunpack.c.l.s4 1983009808
        %v969 = vunpack.c.0.s8 %v968
        %v970 = vperm.slane %v964, %v969
        %v972 = vunpack.c.l.s4 1983009808
        %v973 = vunpack.c.0.s8 %v972
        %v974 = vperm.slane %v966, %v973
        %v975 = vrot.slane %v958, 4
        %v976 = vsel %vm830, %v975, %v954
        %v977 = vrot.slane %v954, 4
        %v978 = vsel %vm830, %v958, %v977
        %v980 = vunpack.c.l.s4 1983009808
        %v981 = vunpack.c.0.s8 %v980
        %v982 = vperm.slane %v976, %v981
        %v984 = vunpack.c.l.s4 1983009808
        %v985 = vunpack.c.0.s8 %v984
        %v986 = vperm.slane %v978, %v985
        %v987 = vrot.slane %v982, 4
        %v988 = vsel %vm830, %v987, %v970
        %v989 = vrot.slane %v970, 4
        %v990 = vsel %vm830, %v982, %v989
        %v992 = vunpack.c.l.s4 1934713408
        %v993 = vunpack.c.0.s8 %v992
        %v994 = vperm.slane %v988, %v993
        %v996 = vunpack.c.l.s4 1934713408
        %v997 = vunpack.c.0.s8 %v996
        %v998 = vperm.slane %v990, %v997
        %v999 = vrot.slane %v986, 4
        %v1000 = vsel %vm830, %v999, %v974
        %v1001 = vrot.slane %v974, 4
        %v1002 = vsel %vm830, %v986, %v1001
        %v1004 = vunpack.c.l.s4 1934713408
        %v1005 = vunpack.c.0.s8 %v1004
        %v1006 = vperm.slane %v1000, %v1005
        %v1008 = vunpack.c.l.s4 1934713408
        %v1009 = vunpack.c.0.s8 %v1008
        %v1010 = vperm.slane %v1002, %v1009
        %v1011 = vrot.slane %v994, 4
        %v1012 = vsel %vm830, 0.0, %v1011
        %v1013 = vrot.slane %v998, 4
        %v1014 = vsel %vm830, 0.0, %v1013
        %v1015 = vrot.slane %v1006, 4
        %v1016 = vsel %vm830, 0.0, %v1015
        %v1017 = vrot.slane %v1010, 4
        %v1018 = vsel %vm830, 0.0, %v1017
        %v1019 = vsel %vm830, %v1013, %v994
        %v1021 = vunpack.c.l.s4 1983009808
        %v1022 = vunpack.c.0.s8 %v1021
        %v1023 = vperm.slane %v1019, %v1022
        %v1024 = vrot.slane %v1014, 4
        %v1025 = vsel %vm830, %v1024, %v1012
        %v1027 = vunpack.c.l.s4 1983009808
        %v1028 = vunpack.c.0.s8 %v1027
        %v1029 = vperm.slane %v1025, %v1028
        %v1030 = vsel %vm830, %v1017, %v1006
        %v1032 = vunpack.c.l.s4 1983009808
        %v1033 = vunpack.c.0.s8 %v1032
        %v1034 = vperm.slane %v1030, %v1033
        %v1035 = vrot.slane %v1018, 4
        %v1036 = vsel %vm830, %v1035, %v1016
        %v1038 = vunpack.c.l.s4 1983009808
        %v1039 = vunpack.c.0.s8 %v1038
        %v1040 = vperm.slane %v1036, %v1039
        %v1041 = vrot.slane %v1029, 4
        %v1042 = vsel %vm830, %v1041, %v1023
        %v1043 = vrot.slane %v1023, 4
        %v1044 = vsel %vm830, %v1029, %v1043
        %v1046 = vunpack.c.l.s4 1934713408
        %v1047 = vunpack.c.0.s8 %v1046
        %v1048 = vperm.slane %v1042, %v1047
        %v1050 = vunpack.c.l.s4 1934713408
        %v1051 = vunpack.c.0.s8 %v1050
        %v1052 = vperm.slane %v1044, %v1051
        %v1053 = vrot.slane %v1040, 4
        %v1054 = vsel %vm830, %v1053, %v1034
        %v1055 = vrot.slane %v1034, 4
        %v1056 = vsel %vm830, %v1040, %v1055
        %v1058 = vunpack.c.l.s4 1934713408
        %v1059 = vunpack.c.0.s8 %v1058
        %v1060 = vperm.slane %v1054, %v1059
        %v1062 = vunpack.c.l.s4 1934713408
        %v1063 = vunpack.c.0.s8 %v1062
        %v1064 = vperm.slane %v1056, %v1063
        %v1065 = vrot.slane %v1060, 4
        %v1066 = vsel %vm830, %v1065, %v1048
        %v1067 = vrot.slane %v1048, 4
        %v1068 = vsel %vm830, %v1060, %v1067
        %v1069 = vrot.slane %v1064, 4
        %v1070 = vsel %vm830, %v1069, %v1052
        %v1071 = vrot.slane %v1052, 4
        %v1072 = vsel %vm830, %v1064, %v1071
        %v1073 = vpack.c.bf16 %v1066, %v1066
        %v1074 = vpack.c.bf16 %v1068, %v1068
        %v1075 = vpack.c.bf16 %v1070, %v1070
        %v1076 = vpack.c.bf16 %v1072, %v1072
        %1077 = vrot.lane.b32.xlu0 %v815, 64
        %v1078 = vpop.permute.xlu0 %1077
        %1079 = vrot.lane.b32.xlu0 %v946, 64
        %v1080 = vpop.permute.xlu0 %1079
        %1081 = vrot.lane.b32.xlu0 %v948, 64
        %v1082 = vpop.permute.xlu0 %1081
        %1083 = vrot.lane.b32.xlu0 %v950, 64
        %v1084 = vpop.permute.xlu0 %1083
        %v1089 = vrot.slane %v1082, 4
        %v1090 = vsel %vm830, %v1089, %v1078
        %v1091 = vrot.slane %v1078, 4
        %v1092 = vsel %vm830, %v1082, %v1091
        %v1094 = vunpack.c.l.s4 1983009808
        %v1095 = vunpack.c.0.s8 %v1094
        %v1096 = vperm.slane %v1090, %v1095
        %v1098 = vunpack.c.l.s4 1983009808
        %v1099 = vunpack.c.0.s8 %v1098
        %v1100 = vperm.slane %v1092, %v1099
        %v1101 = vrot.slane %v1084, 4
        %v1102 = vsel %vm830, %v1101, %v1080
        %v1103 = vrot.slane %v1080, 4
        %v1104 = vsel %vm830, %v1084, %v1103
        %v1106 = vunpack.c.l.s4 1983009808
        %v1107 = vunpack.c.0.s8 %v1106
        %v1108 = vperm.slane %v1102, %v1107
        %v1110 = vunpack.c.l.s4 1983009808
        %v1111 = vunpack.c.0.s8 %v1110
        %v1112 = vperm.slane %v1104, %v1111
        %v1113 = vrot.slane %v1108, 4
        %v1114 = vsel %vm830, %v1113, %v1096
        %v1115 = vrot.slane %v1096, 4
        %v1116 = vsel %vm830, %v1108, %v1115
        %v1118 = vunpack.c.l.s4 1934713408
        %v1119 = vunpack.c.0.s8 %v1118
        %v1120 = vperm.slane %v1114, %v1119
        %v1122 = vunpack.c.l.s4 1934713408
        %v1123 = vunpack.c.0.s8 %v1122
        %v1124 = vperm.slane %v1116, %v1123
        %v1125 = vrot.slane %v1112, 4
        %v1126 = vsel %vm830, %v1125, %v1100
        %v1127 = vrot.slane %v1100, 4
        %v1128 = vsel %vm830, %v1112, %v1127
        %v1130 = vunpack.c.l.s4 1934713408
        %v1131 = vunpack.c.0.s8 %v1130
        %v1132 = vperm.slane %v1126, %v1131
        %v1134 = vunpack.c.l.s4 1934713408
        %v1135 = vunpack.c.0.s8 %v1134
        %v1136 = vperm.slane %v1128, %v1135
        %v1137 = vrot.slane %v1120, 4
        %v1138 = vsel %vm830, 0.0, %v1137
        %v1139 = vrot.slane %v1124, 4
        %v1140 = vsel %vm830, 0.0, %v1139
        %v1141 = vrot.slane %v1132, 4
        %v1142 = vsel %vm830, 0.0, %v1141
        %v1143 = vrot.slane %v1136, 4
        %v1144 = vsel %vm830, 0.0, %v1143
        %v1145 = vsel %vm830, %v1139, %v1120
        %v1147 = vunpack.c.l.s4 1983009808
        %v1148 = vunpack.c.0.s8 %v1147
        %v1149 = vperm.slane %v1145, %v1148
        %v1150 = vrot.slane %v1140, 4
        %v1151 = vsel %vm830, %v1150, %v1138
        %v1153 = vunpack.c.l.s4 1983009808
        %v1154 = vunpack.c.0.s8 %v1153
        %v1155 = vperm.slane %v1151, %v1154
        %v1156 = vsel %vm830, %v1143, %v1132
        %v1158 = vunpack.c.l.s4 1983009808
        %v1159 = vunpack.c.0.s8 %v1158
        %v1160 = vperm.slane %v1156, %v1159
        %v1161 = vrot.slane %v1144, 4
        %v1162 = vsel %vm830, %v1161, %v1142
        %v1164 = vunpack.c.l.s4 1983009808
        %v1165 = vunpack.c.0.s8 %v1164
        %v1166 = vperm.slane %v1162, %v1165
        %v1167 = vrot.slane %v1155, 4
        %v1168 = vsel %vm830, %v1167, %v1149
        %v1169 = vrot.slane %v1149, 4
        %v1170 = vsel %vm830, %v1155, %v1169
        %v1172 = vunpack.c.l.s4 1934713408
        %v1173 = vunpack.c.0.s8 %v1172
        %v1174 = vperm.slane %v1168, %v1173
        %v1176 = vunpack.c.l.s4 1934713408
        %v1177 = vunpack.c.0.s8 %v1176
        %v1178 = vperm.slane %v1170, %v1177
        %v1179 = vrot.slane %v1166, 4
        %v1180 = vsel %vm830, %v1179, %v1160
        %v1181 = vrot.slane %v1160, 4
        %v1182 = vsel %vm830, %v1166, %v1181
        %v1184 = vunpack.c.l.s4 1934713408
        %v1185 = vunpack.c.0.s8 %v1184
        %v1186 = vperm.slane %v1180, %v1185
        %v1188 = vunpack.c.l.s4 1934713408
        %v1189 = vunpack.c.0.s8 %v1188
        %v1190 = vperm.slane %v1182, %v1189
        %v1191 = vrot.slane %v1186, 4
        %v1192 = vsel %vm830, %v1191, %v1174
        %v1193 = vrot.slane %v1174, 4
        %v1194 = vsel %vm830, %v1186, %v1193
        %v1195 = vrot.slane %v1190, 4
        %v1196 = vsel %vm830, %v1195, %v1178
        %v1197 = vrot.slane %v1178, 4
        %v1198 = vsel %vm830, %v1190, %v1197
        %v1199 = vpack.c.bf16 %v1192, %v1192
        %v1200 = vpack.c.bf16 %v1194, %v1194
        %v1201 = vpack.c.bf16 %v1196, %v1196
        %v1202 = vpack.c.bf16 %v1198, %v1198
        %vm1203 = vcmask 64512
        %v1205 = vsel %vm1203, %v940, 0
        %v1208 = vsel %vm1203, %v1073, 0
        %1210 = vmatpush.bf16.xpose.msra.mxu0 0
        %1211 = vmatpush.bf16.xpose.msra.mxu0 0
        %1212 = vmatpush.bf16.xpose.msra.mxu0 0
        %1213 = vmatpush.bf16.xpose.msra.mxu0 0
        %1214 = vmatpush.bf16.xpose.msra.mxu0 0
        %1215 = vmatpush.bf16.xpose.msra.mxu0 0
        %1216 = vmatpush.bf16.xpose.msra.mxu0 0
        %1217 = vmatpush.bf16.xpose.msra.mxu0 %v1208
        %1218 = vmatmul.bf16.gmra.mxu0 %v1205
        %v1219 = vpop.f32.mrf.mxu0
        %v1220 = vadd.f32 %v717, %v1219
        %v1221 = vpop.f32.mrf.mxu0
        %1222 = vdwg.mxu0
        %v1224 = vsel %vm1203, %v941, 0
        %v1227 = vsel %vm1203, %v1074, 0
        %1229 = vmatpush.bf16.xpose.msra.mxu0 0
        %1230 = vmatpush.bf16.xpose.msra.mxu0 0
        %1231 = vmatpush.bf16.xpose.msra.mxu0 0
        %1232 = vmatpush.bf16.xpose.msra.mxu0 0
        %1233 = vmatpush.bf16.xpose.msra.mxu0 0
        %1234 = vmatpush.bf16.xpose.msra.mxu0 0
        %1235 = vmatpush.bf16.xpose.msra.mxu0 0
        %1236 = vmatpush.bf16.xpose.msra.mxu0 %v1227
        %1237 = vmatmul.bf16.gmra.mxu0 %v1224
        %v1238 = vpop.f32.mrf.mxu0
        %v1239 = vadd.f32 %v717, %v1238
        %v1240 = vpop.f32.mrf.mxu0
        %1241 = vdwg.mxu0
        %v1243 = vsel %vm1203, %v942, 0
        %v1246 = vsel %vm1203, %v1075, 0
        %1248 = vmatpush.bf16.xpose.msra.mxu0 0
        %1249 = vmatpush.bf16.xpose.msra.mxu0 0
        %1250 = vmatpush.bf16.xpose.msra.mxu0 0
        %1251 = vmatpush.bf16.xpose.msra.mxu0 0
        %1252 = vmatpush.bf16.xpose.msra.mxu0 0
        %1253 = vmatpush.bf16.xpose.msra.mxu0 0
        %1254 = vmatpush.bf16.xpose.msra.mxu0 0
        %1255 = vmatpush.bf16.xpose.msra.mxu0 %v1246
        %1256 = vmatmul.bf16.gmra.mxu0 %v1243
        %v1257 = vpop.f32.mrf.mxu0
        %v1258 = vadd.f32 %v717, %v1257
        %v1259 = vpop.f32.mrf.mxu0
        %1260 = vdwg.mxu0
        %v1262 = vsel %vm1203, %v943, 0
        %v1265 = vsel %vm1203, %v1076, 0
        %1267 = vmatpush.bf16.xpose.msra.mxu0 0
        %1268 = vmatpush.bf16.xpose.msra.mxu0 0
        %1269 = vmatpush.bf16.xpose.msra.mxu0 0
        %1270 = vmatpush.bf16.xpose.msra.mxu0 0
        %1271 = vmatpush.bf16.xpose.msra.mxu0 0
        %1272 = vmatpush.bf16.xpose.msra.mxu0 0
        %1273 = vmatpush.bf16.xpose.msra.mxu0 0
        %1274 = vmatpush.bf16.xpose.msra.mxu0 %v1265
        %1275 = vmatmul.bf16.gmra.mxu0 %v1262
        %v1276 = vpop.f32.mrf.mxu0
        %v1277 = vadd.f32 %v717, %v1276
        %v1278 = vpop.f32.mrf.mxu0
        %1279 = vdwg.mxu0
        %v1280 = vsel %vm1203, %v1220, -inf
        %1281 = vmax.xlane.f32.xlu0 %v1280
        %v1282 = vpop.xlane.xlu0 %1281
        %v1283 = vsel %vm1203, %v1239, -inf
        %1284 = vmax.xlane.f32.xlu0 %v1283
        %v1285 = vpop.xlane.xlu0 %1284
        %v1286 = vsel %vm1203, %v1258, -inf
        %1287 = vmax.xlane.f32.xlu0 %v1286
        %v1288 = vpop.xlane.xlu0 %1287
        %v1289 = vsel %vm1203, %v1277, -inf
        %1290 = vmax.xlane.f32.xlu0 %v1289
        %v1291 = vpop.xlane.xlu0 %1290
        %v1292 = vsub.f32 %v1220, %v1282
        %v1293 = vsub.f32 %v1239, %v1285
        %v1294 = vsub.f32 %v1258, %v1288
        %v1295 = vsub.f32 %v1277, %v1291
        %v1296 = vmul.f32 %v1292, 1.442695
        %v1297 = vpow.pop %v1296
        %v1298 = vmul.f32 %v1293, 1.442695
        %v1299 = vpow.pop %v1298
        %v1300 = vmul.f32 %v1294, 1.442695
        %v1301 = vpow.pop %v1300
        %v1302 = vmul.f32 %v1295, 1.442695
        %v1303 = vpow.pop %v1302
        %v1304 = vsel %vm1203, %v1297, 0.0
        %1305 = vadd.xlane.f32.xlu0 %v1304
        %v1306 = vpop.xlane.xlu0 %1305
        %v1307 = vsel %vm1203, %v1299, 0.0
        %1308 = vadd.xlane.f32.xlu0 %v1307
        %v1309 = vpop.xlane.xlu0 %1308
        %v1310 = vsel %vm1203, %v1301, 0.0
        %1311 = vadd.xlane.f32.xlu0 %v1310
        %v1312 = vpop.xlane.xlu0 %1311
        %v1313 = vsel %vm1203, %v1303, 0.0
        %1314 = vadd.xlane.f32.xlu0 %v1313
        %v1315 = vpop.xlane.xlu0 %1314
        %v1316 = vrcp.pop %v1306
        %v1317 = vrcp.pop %v1309
        %v1318 = vrcp.pop %v1312
        %v1319 = vrcp.pop %v1315
        %v1320 = vmul.f32 %v1297, %v1316
        %v1321 = vmul.f32 %v1299, %v1317
        %v1322 = vmul.f32 %v1301, %v1318
        %v1323 = vmul.f32 %v1303, %v1319
        %v1324 = vpack.c.bf16 %v1320, %v1320
        %v1325 = vpack.c.bf16 %v1321, %v1321
        %v1326 = vpack.c.bf16 %v1322, %v1322
        %v1327 = vpack.c.bf16 %v1323, %v1323
        %v1329 = vsel %vm1203, %v1324, 0
        %vm1331 = vcmask 1043456
        %v1333 = vsel %vm1331, %v1199, 0
        %1335 = vmatpush.bf16.msra.mxu0 0
        %1336 = vmatpush.bf16.msra.mxu0 0
        %1337 = vmatpush.bf16.msra.mxu0 0
        %1338 = vmatpush.bf16.msra.mxu0 0
        %1339 = vmatpush.bf16.msra.mxu0 0
        %1340 = vmatpush.bf16.msra.mxu0 0
        %1341 = vmatpush.bf16.msra.mxu0 0
        %1342 = vmatpush.bf16.msra.mxu0 %v1333
        %1343 = vmatmul.bf16.gmra.mxu0 %v1329
        %v1344 = vpop.f32.mrf.mxu0
        %v1345 = vadd.f32 0.0, %v1344
        %v1346 = vpop.f32.mrf.mxu0
        %1347 = vdwg.mxu0
        %v1349 = vsel %vm1203, %v1325, 0
        %v1352 = vsel %vm1331, %v1200, 0
        %1354 = vmatpush.bf16.msra.mxu0 0
        %1355 = vmatpush.bf16.msra.mxu0 0
        %1356 = vmatpush.bf16.msra.mxu0 0
        %1357 = vmatpush.bf16.msra.mxu0 0
        %1358 = vmatpush.bf16.msra.mxu0 0
        %1359 = vmatpush.bf16.msra.mxu0 0
        %1360 = vmatpush.bf16.msra.mxu0 0
        %1361 = vmatpush.bf16.msra.mxu0 %v1352
        %1362 = vmatmul.bf16.gmra.mxu0 %v1349
        %v1363 = vpop.f32.mrf.mxu0
        %v1364 = vadd.f32 0.0, %v1363
        %v1365 = vpop.f32.mrf.mxu0
        %1366 = vdwg.mxu0
        %v1368 = vsel %vm1203, %v1326, 0
        %v1371 = vsel %vm1331, %v1201, 0
        %1373 = vmatpush.bf16.msra.mxu0 0
        %1374 = vmatpush.bf16.msra.mxu0 0
        %1375 = vmatpush.bf16.msra.mxu0 0
        %1376 = vmatpush.bf16.msra.mxu0 0
        %1377 = vmatpush.bf16.msra.mxu0 0
        %1378 = vmatpush.bf16.msra.mxu0 0
        %1379 = vmatpush.bf16.msra.mxu0 0
        %1380 = vmatpush.bf16.msra.mxu0 %v1371
        %1381 = vmatmul.bf16.gmra.mxu0 %v1368
        %v1382 = vpop.f32.mrf.mxu0
        %v1383 = vadd.f32 0.0, %v1382
        %v1384 = vpop.f32.mrf.mxu0
        %1385 = vdwg.mxu0
        %v1387 = vsel %vm1203, %v1327, 0
        %v1390 = vsel %vm1331, %v1202, 0
        %1392 = vmatpush.bf16.msra.mxu0 0
        %1393 = vmatpush.bf16.msra.mxu0 0
        %1394 = vmatpush.bf16.msra.mxu0 0
        %1395 = vmatpush.bf16.msra.mxu0 0
        %1396 = vmatpush.bf16.msra.mxu0 0
        %1397 = vmatpush.bf16.msra.mxu0 0
        %1398 = vmatpush.bf16.msra.mxu0 0
        %1399 = vmatpush.bf16.msra.mxu0 %v1390
        %1400 = vmatmul.bf16.gmra.mxu0 %v1387
        %v1401 = vpop.f32.mrf.mxu0
        %v1402 = vadd.f32 0.0, %v1401
        %v1403 = vpop.f32.mrf.mxu0
        %1404 = vdwg.mxu0
        %v1405 = vrot.slane %v1383, 4
        %v1406 = vsel %vm830, %v1405, %v1345
        %v1407 = vrot.slane %v1345, 4
        %v1408 = vsel %vm830, %v1383, %v1407
        %v1410 = vunpack.c.l.s4 1983009808
        %v1411 = vunpack.c.0.s8 %v1410
        %v1412 = vperm.slane %v1406, %v1411
        %v1414 = vunpack.c.l.s4 1983009808
        %v1415 = vunpack.c.0.s8 %v1414
        %v1416 = vperm.slane %v1408, %v1415
        %v1417 = vrot.slane %v1402, 4
        %v1418 = vsel %vm830, %v1417, %v1364
        %v1419 = vrot.slane %v1364, 4
        %v1420 = vsel %vm830, %v1402, %v1419
        %v1422 = vunpack.c.l.s4 1983009808
        %v1423 = vunpack.c.0.s8 %v1422
        %v1424 = vperm.slane %v1418, %v1423
        %v1426 = vunpack.c.l.s4 1983009808
        %v1427 = vunpack.c.0.s8 %v1426
        %v1428 = vperm.slane %v1420, %v1427
        %v1429 = vrot.slane %v1424, 4
        %v1430 = vsel %vm830, %v1429, %v1412
        %v1431 = vrot.slane %v1412, 4
        %v1432 = vsel %vm830, %v1424, %v1431
        %v1434 = vunpack.c.l.s4 1934713408
        %v1435 = vunpack.c.0.s8 %v1434
        %v1436 = vperm.slane %v1430, %v1435
        %v1438 = vunpack.c.l.s4 1934713408
        %v1439 = vunpack.c.0.s8 %v1438
        %v1440 = vperm.slane %v1432, %v1439
        %v1441 = vrot.slane %v1428, 4
        %v1442 = vsel %vm830, %v1441, %v1416
        %v1443 = vrot.slane %v1416, 4
        %v1444 = vsel %vm830, %v1428, %v1443
        %v1446 = vunpack.c.l.s4 1934713408
        %v1447 = vunpack.c.0.s8 %v1446
        %v1448 = vperm.slane %v1442, %v1447
        %v1450 = vunpack.c.l.s4 1934713408
        %v1451 = vunpack.c.0.s8 %v1450
        %v1452 = vperm.slane %v1444, %v1451
        %v1453 = vrot.slane %v1436, 4
        %v1454 = vsel %vm830, 0.0, %v1453
        %v1455 = vrot.slane %v1440, 4
        %v1456 = vsel %vm830, 0.0, %v1455
        %v1457 = vrot.slane %v1448, 4
        %v1458 = vsel %vm830, 0.0, %v1457
        %v1459 = vrot.slane %v1452, 4
        %v1460 = vsel %vm830, 0.0, %v1459
        %v1461 = vsel %vm830, %v1455, %v1436
        %v1463 = vunpack.c.l.s4 1983009808
        %v1464 = vunpack.c.0.s8 %v1463
        %v1465 = vperm.slane %v1461, %v1464
        %v1466 = vrot.slane %v1456, 4
        %v1467 = vsel %vm830, %v1466, %v1454
        %v1469 = vunpack.c.l.s4 1983009808
        %v1470 = vunpack.c.0.s8 %v1469
        %v1471 = vperm.slane %v1467, %v1470
        %v1472 = vsel %vm830, %v1459, %v1448
        %v1474 = vunpack.c.l.s4 1983009808
        %v1475 = vunpack.c.0.s8 %v1474
        %v1476 = vperm.slane %v1472, %v1475
        %v1477 = vrot.slane %v1460, 4
        %v1478 = vsel %vm830, %v1477, %v1458
        %v1480 = vunpack.c.l.s4 1983009808
        %v1481 = vunpack.c.0.s8 %v1480
        %v1482 = vperm.slane %v1478, %v1481
        %v1483 = vrot.slane %v1471, 4
        %v1484 = vsel %vm830, %v1483, %v1465
        %v1485 = vrot.slane %v1465, 4
        %v1486 = vsel %vm830, %v1471, %v1485
        %v1488 = vunpack.c.l.s4 1934713408
        %v1489 = vunpack.c.0.s8 %v1488
        %v1490 = vperm.slane %v1484, %v1489
        %v1492 = vunpack.c.l.s4 1934713408
        %v1493 = vunpack.c.0.s8 %v1492
        %v1494 = vperm.slane %v1486, %v1493
        %v1495 = vrot.slane %v1482, 4
        %v1496 = vsel %vm830, %v1495, %v1476
        %v1497 = vrot.slane %v1476, 4
        %v1498 = vsel %vm830, %v1482, %v1497
        %v1500 = vunpack.c.l.s4 1934713408
        %v1501 = vunpack.c.0.s8 %v1500
        %v1502 = vperm.slane %v1496, %v1501
        %v1504 = vunpack.c.l.s4 1934713408
        %v1505 = vunpack.c.0.s8 %v1504
        %v1506 = vperm.slane %v1498, %v1505
        %v1507 = vrot.slane %v1502, 4
        %v1508 = vsel %vm830, %v1507, %v1490
        %v1509 = vrot.slane %v1490, 4
        %v1510 = vsel %vm830, %v1502, %v1509
        %v1511 = vrot.slane %v1506, 4
        %v1512 = vsel %vm830, %v1511, %v1494
        %v1513 = vrot.slane %v1494, 4
        %v1514 = vsel %vm830, %v1506, %v1513
        %1516 = vrot.lane.b32.xlu0 %v1510, 8
        %v1517 = vpop.permute.xlu0 %1516
        %1520 = vrot.lane.b32.xlu0 %v1512, 16
        %v1521 = vpop.permute.xlu0 %1520
        %1524 = vrot.lane.b32.xlu0 %v1514, 24
        %v1525 = vpop.permute.xlu0 %1524
        %v1527 = vsel %vm1203, %v1508, %v1517
        %vm1528 = vcmask 130048
        %v1529 = vsel %vm1528, %v1527, %v1521
        %vm1530 = vcmask 195584
        %v1531 = vsel %vm1530, %v1529, %v1525
        %v1532 = vpack.c.bf16 %v1531, %v1531
        %v1533 = vld [vmem:[%s677] sm:$0xf]
        %v1534 = vld [vmem:[%s677 + $0x4] sm:$0xf]
        %v1535 = vld [vmem:[%s677 + $0x8] sm:$0xf]
        %v1536 = vld [vmem:[%s677 + $0xc] sm:$0xf]
        %v1537 = vld [vmem:[%s680] sm:$0x1]
        %v1539 = vperm.slane %v1537, 0
        %v1545 = vunpack.c.l.b16 %v1533
        %v1546 = vunpack.c.l.b16 %v1534
        %v1547 = vunpack.c.l.b16 %v1535
        %v1548 = vunpack.c.l.b16 %v1536
        %v1549 = vpack.c.b16 %v1546, %v1545
        %v1550 = vpack.c.b16 %v1548, %v1547
        %v1554 = vsel %vm720, %v1532, 0
        %1556 = vmatpush.bf16.msra.mxu0 0
        %1557 = vmatpush.bf16.msra.mxu0 0
        %1558 = vmatpush.bf16.msra.mxu0 0
        %1559 = vmatpush.bf16.msra.mxu0 0
        %1560 = vmatpush.bf16.msra.mxu0 0
        %1561 = vmatpush.bf16.msra.mxu0 0
        %1562 = vmatpush.bf16.msra.mxu0 %v1550
        %1563 = vmatpush.bf16.msra.mxu0 %v1549
        %1564 = vmatmul.bf16.gmra.mxu0 %v1554
        %v1565 = vpop.f32.mrf.mxu0
        %v1566 = vadd.f32 %v1539, %v1565
        %v1567 = vpop.f32.mrf.mxu0
        %1568 = vdwg.mxu0
        %v1569 = vadd.f32 %v711, %v1566
        %v1570 = vld [vmem:[%s683] sm:$0x1]
        %v1571 = vld [vmem:[%s686] sm:$0x1]
        %v1572 = vsel %vm720, %v1569, 0.0
        %1573 = vadd.xlane.f32.xlu0 %v1572
        %v1574 = vpop.xlane.xlu0 %1573
        %v1575 = vmul.f32 %v1574, %v730
        %v1576 = vsub.f32 %v1569, %v1575
        %v1577 = vmul.f32 %v1576, %v1576
        %v1578 = vsel %vm720, %v1577, 0.0
        %1579 = vadd.xlane.f32.xlu0 %v1578
        %v1580 = vpop.xlane.xlu0 %1579
        %v1581 = vmul.f32 %v1580, %v743
        %v1582 = vrsqrt.pop %v1581
        %v1583 = vmul.f32 %v1582, %v1581
        %v1584 = vmul.f32 %v1583, %v1582
        %v1585 = vmul.f32 0.5, %v1584
        %v1586 = vsub.f32 1.5, %v1585
        %v1587 = vmul.f32 %v1582, %v1586
        %v1588 = vmul.f32 %v1581, %v1587
        %vm1589 = vcmp.eq.f32.partialorder %v1581, inf
        %v1590 = vsel %vm1589, %v1581, %v1588
        %vm1591 = vcmp.eq.f32.partialorder %v1581, 0.0
        %v1592 = vand.u32 %v1581, 2147483648
        %v1593 = vsel %vm1591, %v1592, %v1590
        %v1595 = vperm.slane %v1570, 0
        %v1597 = vmul.f32 %v1595, %v1576
        %v1598 = vadd.f32 %v1593, 1e-06
        %v1599 = vrcp.pop %v1598
        %v1600 = vmul.f32 %v1598, %v1599
        %v1601 = vsub.f32 1.0, %v1600
        %v1602 = vmul.f32 %v1599, %v1601
        %v1603 = vadd.f32 %v1599, %v1602
        %vm1604 = vweird.f32 %v1598
        %vm1605 = vweird.f32 %v1599
        %vm1606 = vmor %vm1604, %vm1605
        %v1607 = vsel %vm1606, %v1599, %v1603
        %v1608 = vand.u32 2147483647, %v1598
        %vm1609 = vcmp.eq.f32.partialorder %v1608, 8.507059e+37
        %v1610 = vand.u32 %v1598, 2147483648
        %v1611 = vor.u32 1.1754944e-38, %v1610
        %v1612 = vsel %vm1609, %v1611, %v1607
        %v1613 = vmul.f32 %v1597, %v1612
        %v1615 = vperm.slane %v1571, 0
        %v1617 = vadd.f32 %v1613, %v1615
        %v1618 = vpack.c.bf16 %v1617, %v1617
        %v1619 = vld [vmem:[%s691] sm:$0xf]
        %v1620 = vld [vmem:[%s691 + $0x4] sm:$0xf]
        %v1621 = vld [vmem:[%s691 + $0x8] sm:$0xf]
        %v1622 = vld [vmem:[%s691 + $0xc] sm:$0xf]
        %v1623 = vld [vmem:[%s694] sm:$0x1]
        %v1625 = vperm.slane %v1623, 0
        %v1631 = vunpack.c.l.b16 %v1619
        %v1632 = vunpack.c.l.b16 %v1620
        %v1633 = vunpack.c.l.b16 %v1621
        %v1634 = vunpack.c.l.b16 %v1622
        %v1635 = vpack.c.b16 %v1632, %v1631
        %v1636 = vpack.c.b16 %v1634, %v1633
        %v1640 = vsel %vm720, %v1618, 0
        %1642 = vmatpush.bf16.msra.mxu0 0
        %1643 = vmatpush.bf16.msra.mxu0 0
        %1644 = vmatpush.bf16.msra.mxu0 0
        %1645 = vmatpush.bf16.msra.mxu0 0
        %1646 = vmatpush.bf16.msra.mxu0 0
        %1647 = vmatpush.bf16.msra.mxu0 0
        %1648 = vmatpush.bf16.msra.mxu0 %v1636
        %1649 = vmatpush.bf16.msra.mxu0 %v1635
        %1650 = vmatmul.bf16.gmra.mxu0 %v1640
        %v1651 = vpop.f32.mrf.mxu0
        %v1652 = vadd.f32 %v1625, %v1651
        %v1653 = vpop.f32.mrf.mxu0
        %1654 = vdwg.mxu0
        %v1655 = vmax.f32 %v1652, 0.0
        %v1656 = vpack.c.bf16 %v1655, %v1655
        %v1657 = vld [vmem:[%s699] sm:$0xf]
        %v1658 = vld [vmem:[%s699 + $0x4] sm:$0xf]
        %v1659 = vld [vmem:[%s699 + $0x8] sm:$0xf]
        %v1660 = vld [vmem:[%s699 + $0xc] sm:$0xf]
        %v1661 = vld [vmem:[%s699 + $0x10] sm:$0xf]
        %v1662 = vld [vmem:[%s699 + $0x14] sm:$0xf]
        %v1663 = vld [vmem:[%s699 + $0x18] sm:$0xf]
        %v1664 = vld [vmem:[%s699 + $0x1c] sm:$0xf]
        %v1665 = vld [vmem:[%s699 + $0x20] sm:$0xf]
        %v1666 = vld [vmem:[%s699 + $0x24] sm:$0xf]
        %v1667 = vld [vmem:[%s699 + $0x28] sm:$0xf]
        %v1668 = vld [vmem:[%s699 + $0x2c] sm:$0xf]
        %v1669 = vld [vmem:[%s699 + $0x30] sm:$0xf]
        %v1670 = vld [vmem:[%s699 + $0x34] sm:$0xf]
        %v1671 = vld [vmem:[%s699 + $0x38] sm:$0xf]
        %v1672 = vld [vmem:[%s699 + $0x3c] sm:$0xf]
        %v1673 = vld [vmem:[%s702] sm:$0x1]
        %v1675 = vperm.slane %v1673, 0
        %v1693 = vunpack.c.l.b16 %v1657
        %v1694 = vunpack.c.l.b16 %v1658
        %v1695 = vunpack.c.l.b16 %v1659
        %v1696 = vunpack.c.l.b16 %v1660
        %v1697 = vunpack.c.l.b16 %v1661
        %v1698 = vunpack.c.l.b16 %v1662
        %v1699 = vunpack.c.l.b16 %v1663
        %v1700 = vunpack.c.l.b16 %v1664
        %v1701 = vunpack.c.l.b16 %v1665
        %v1702 = vunpack.c.l.b16 %v1666
        %v1703 = vunpack.c.l.b16 %v1667
        %v1704 = vunpack.c.l.b16 %v1668
        %v1705 = vunpack.c.l.b16 %v1669
        %v1706 = vunpack.c.l.b16 %v1670
        %v1707 = vunpack.c.l.b16 %v1671
        %v1708 = vunpack.c.l.b16 %v1672
        %v1709 = vpack.c.b16 %v1694, %v1693
        %v1710 = vpack.c.b16 %v1696, %v1695
        %v1711 = vpack.c.b16 %v1698, %v1697
        %v1712 = vpack.c.b16 %v1700, %v1699
        %v1713 = vpack.c.b16 %v1702, %v1701
        %v1714 = vpack.c.b16 %v1704, %v1703
        %v1715 = vpack.c.b16 %v1706, %v1705
        %v1716 = vpack.c.b16 %v1708, %v1707
        %1725 = vmatpush.bf16.msra.mxu0 %v1716
        %1726 = vmatpush.bf16.msra.mxu0 %v1715
        %1727 = vmatpush.bf16.msra.mxu0 %v1714
        %1728 = vmatpush.bf16.msra.mxu0 %v1713
        %1729 = vmatpush.bf16.msra.mxu0 %v1712
        %1730 = vmatpush.bf16.msra.mxu0 %v1711
        %1731 = vmatpush.bf16.msra.mxu0 %v1710
        %1732 = vmatpush.bf16.msra.mxu0 %v1709
        %1733 = vmatmul.bf16.gmra.mxu0 %v1656
        %v1734 = vpop.f32.mrf.mxu0
        %v1735 = vadd.f32 %v1675, %v1734
        %v1736 = vpop.f32.mrf.mxu0
        %1737 = vdwg.mxu0
        %v1738 = vadd.f32 %v1569, %v1735
        %1739 = vst.msk [vmem:[#allocation2] sm:$0xff] %vm720, %v1738
        %p1740 = scmp.eq.s32.totalorder %s43, 1
        // Predicated region
        $region85: #{tpu_custom_call.1} parent=79 // pred_check
          %p1741 = pneg %p1740
        $region86: #{tpu_custom_call.1} parent=79 // pred_check_branch
          %1743 = sbr.rel (%p1741) target = $region88
        $region87: #{tpu_custom_call.1} parent=79 // pred_region
          %v1744 = vld [vmem:[%s14] sm:$0x1]
          %v1745 = vld [vmem:[%s15] sm:$0x1]
          %v1746 = vsel %vm720, %v1738, 0.0
          %1747 = vadd.xlane.f32.xlu0 %v1746
          %v1748 = vpop.xlane.xlu0 %1747
          %v1749 = vmul.f32 %v1748, %v730
          %v1750 = vsub.f32 %v1738, %v1749
          %v1751 = vmul.f32 %v1750, %v1750
          %v1752 = vsel %vm720, %v1751, 0.0
          %1753 = vadd.xlane.f32.xlu0 %v1752
          %v1754 = vpop.xlane.xlu0 %1753
          %v1755 = vmul.f32 %v1754, %v743
          %v1756 = vrsqrt.pop %v1755
          %v1757 = vmul.f32 %v1756, %v1755
          %v1758 = vmul.f32 %v1757, %v1756
          %v1759 = vmul.f32 0.5, %v1758
          %v1760 = vsub.f32 1.5, %v1759
          %v1761 = vmul.f32 %v1756, %v1760
          %v1762 = vmul.f32 %v1755, %v1761
          %vm1763 = vcmp.eq.f32.partialorder %v1755, inf
          %v1764 = vsel %vm1763, %v1755, %v1762
          %vm1765 = vcmp.eq.f32.partialorder %v1755, 0.0
          %v1766 = vand.u32 %v1755, 2147483648
          %v1767 = vsel %vm1765, %v1766, %v1764
          %v1769 = vperm.slane %v1744, 0
          %v1771 = vmul.f32 %v1769, %v1750
          %v1772 = vadd.f32 %v1767, 1e-06
          %v1773 = vrcp.pop %v1772
          %v1774 = vmul.f32 %v1772, %v1773
          %v1775 = vsub.f32 1.0, %v1774
          %v1776 = vmul.f32 %v1773, %v1775
          %v1777 = vadd.f32 %v1773, %v1776
          %vm1778 = vweird.f32 %v1772
          %vm1779 = vweird.f32 %v1773
          %vm1780 = vmor %vm1778, %vm1779
          %v1781 = vsel %vm1780, %v1773, %v1777
          %v1782 = vand.u32 2147483647, %v1772
          %vm1783 = vcmp.eq.f32.partialorder %v1782, 8.507059e+37
          %v1784 = vand.u32 %v1772, 2147483648
          %v1785 = vor.u32 1.1754944e-38, %v1784
          %v1786 = vsel %vm1783, %v1785, %v1781
          %v1787 = vmul.f32 %v1771, %v1786
          %v1789 = vperm.slane %v1745, 0
          %v1791 = vadd.f32 %v1787, %v1789
          %1792 = vst.msk [vmem:[%s654] sm:$0xff] %vm720, %v1791
        $region88: #{tpu_custom_call.1} parent=79 // pred_fallthru
          _
        %s1793 = sand.u32 %s438, 1
        %s1794 = scalar_lea.sflag [#allocation6], %s1793
        %s1795 = sand.u32 %s438, 1
        %s1796 = smul.addr %s1795, 8
        %s1797 = scalar_lea.vmem [#allocation5], %s1796
        // Predicated region
        $region89: #{tpu_custom_call.1} parent=79 // pred_check
          %p1798 = pneg %p448
        $region90: #{tpu_custom_call.1} parent=79 // pred_check_branch
          %1800 = sbr.rel (%p1798) target = $region92
        $region91: #{tpu_custom_call.1} parent=79 // pred_region
          %1802 = vsyncadd %s1794, 0
          %s1803 = smul.addr %s42, 8
          %s1804 = scalar_lea.hbm %s16, %s1803
          %s1806 = sshll.u32 %s1797, 4
          %s1807 = int_to_ptr.vmem [resolvable:$true] %s1806
          %s1808 = sshll.u32 %s1804, 4
          %s1809 = int_to_ptr.hbm [resolvable:$true] %s1808
          %1811 = dma.vmem_to_hbm [thread:$0]  %s1807, 128, %s1809, %s1794
        $region92: #{tpu_custom_call.1} parent=79 // pred_fallthru
          _
      $region80: #{tpu_custom_call.1} parent=5 // pred_fallthru
        _
      %p1812 = scmp.le.s32.totalorder 2, %s33
      // Predicated region
      $region93: #{tpu_custom_call.1} parent=5 // pred_check
        %p1813 = pneg %p1812
      $region94: #{tpu_custom_call.1} parent=5 // pred_check_branch
        %1815 = sbr.rel (%p1813) target = $region96
      $region95: #{tpu_custom_call.1} parent=5 // pred_region
        %s1816 = ssub.s32 %s33, 2
        // Predicated region
        $region97: #{tpu_custom_call.1} parent=95 // pred_check
          %p1817 = pneg %p454
        $region98: #{tpu_custom_call.1} parent=95 // pred_check_branch
          %1819 = sbr.rel (%p1817) target = $region100
        $region99: #{tpu_custom_call.1} parent=95 // pred_region
          %s1820 = sand.u32 %s439, 1
          %s1821 = scalar_lea.sflag [#allocation6], %s1820
          %s1822 = sand.u32 %s439, 1
          %s1823 = smul.addr %s1822, 8
          %s1824 = scalar_lea.vmem [#allocation5], %s1823
          %1826 = dma.done %s1821, 128
        $region100: #{tpu_custom_call.1} parent=95 // pred_fallthru
          _
      $region96: #{tpu_custom_call.1} parent=5 // pred_fallthru
        _
    $region6: #{tpu_custom_call.1} parent=1 // loop_footer
      %s37 = sadd.s32 1, %s33
    $region7: #{tpu_custom_call.1} parent=1 // loop_footer_branch
      %32 = sbr.rel target = $region3
    $region8: #{tpu_custom_call.1} parent=1 // loop_exit
      _
    %1827 = vsyncpa [#allocation6], 1
    %s1828 = scalar_lea.sflag [#allocation6], 1
    %1829 = vsyncpa %s1828, 1

</llo_original>
